<compile_context>
chip_gen: v7x
topology: tpu7x:2x2x1
jax: 0.10.0
libtpu: 0.0.40
codegen_flags: <defaults>
</compile_context>

<pallas_src>
import functools

import jax
import jax.numpy as jnp
from jax.experimental import pallas as pl
from jax.experimental.pallas import tpu as pltpu


# -----------------------------------------------------------------------------
# Fused kernel: 1x1 conv (+folded BN) + ReLU  ->  depthwise KxK (+folded BN) +
# ReLU  ->  [x1 | x2] written to one output tile.
#   x_ref  : (1, H, W, Cin)     full image, resident across the h-tile axis
#   w1_ref : (Cin, Cmid)        BN-scale-folded 1x1 weights
#   b1_ref : (1, Cmid)          folded BN bias
#   w2_ref : (K, K, Cmid)       BN-scale-folded depthwise weights
#   b2_ref : (1, Cmid)          folded BN bias
#   o_ref  : (1, TH, W, 2*Cmid) output tile (x1 in [:Cmid], x2 in [Cmid:])
# -----------------------------------------------------------------------------
def _ghost_kernel(x_ref, w1_ref, b1_ref, w2_ref, b2_ref, o_ref,
                  *, H, W, TH, K, Cmid):
    P = (K - 1) // 2                      # halo rows/cols (1 for K=3)
    h = pl.program_id(1)
    row0 = h * TH

    # ---- tile rows + clamped halo rows (invalid halo rows are masked below) --
    top = x_ref[0, pl.ds(jnp.maximum(row0 - P, 0), P)]          # (P,  W, Cin)
    mid = x_ref[0, pl.ds(row0, TH)]                             # (TH, W, Cin)
    bot = x_ref[0, pl.ds(jnp.minimum(row0 + TH, H - P), P)]     # (P,  W, Cin)
    xwin = jnp.concatenate([top, mid, bot], axis=0)             # (TH+2P, W, Cin)
    rows_w = TH + 2 * P

    # ---- primary 1x1 conv (+ folded BN) + ReLU on the MXU --------------------
    xf = xwin.reshape(rows_w * W, xwin.shape[-1]).astype(jnp.float32)
    x1 = jnp.dot(xf, w1_ref[...].astype(jnp.float32),
                 preferred_element_type=jnp.float32) + b1_ref[...]
    x1 = jnp.maximum(x1, 0.0).reshape(rows_w, W, Cmid)

    # rows outside the image must be exact zeros (zero-padding of x1, not of x)
    rg = row0 - P + jax.lax.broadcasted_iota(jnp.int32, (rows_w, 1, 1), 0)
    x1 = jnp.where((rg >= 0) & (rg < H), x1, 0.0)

    # ---- depthwise KxK conv (+ folded BN) + ReLU on the VPU -------------------
    zc = jnp.zeros((rows_w, P, Cmid), jnp.float32)
    x1p = jnp.concatenate([zc, x1, zc], axis=1)                 # (TH+2P, W+2P, Cmid)
    w2 = w2_ref[...].astype(jnp.float32)
    acc = jnp.zeros((TH, W, Cmid), jnp.float32)
    for ky in range(K):
        for kx in range(K):
            acc = acc + x1p[ky:ky + TH, kx:kx + W, :] * w2[ky, kx, :]
    x2 = jnp.maximum(acc + b2_ref[...], 0.0)

    # ---- one lane-dense store of [x1 | x2] ------------------------------------
    out = jnp.concatenate([x1[P:P + TH], x2], axis=-1)          # (TH, W, 2*Cmid)
    o_ref[0] = out.astype(o_ref.dtype)


def _pick_row_tile(H, max_rows):
    t = max(1, min(H, max_rows))
    while H % t:
        t -= 1
    return t


def ghost_fused_nhwc(x_nhwc, w1s, b1, w2s, b2, *, max_tile_rows=32):
    N, H, W, Cin = x_nhwc.shape
    Cmid = w1s.shape[1]
    K = w2s.shape[0]
    Cout = 2 * Cmid                           # ratio == 2
    TH = _pick_row_tile(H, max_tile_rows)
    nH = H // TH

    kernel = functools.partial(_ghost_kernel, H=H, W=W, TH=TH, K=K, Cmid=Cmid)
    return pl.pallas_call(
        kernel,
        out_shape=jax.ShapeDtypeStruct((N, H, W, Cout), x_nhwc.dtype),
        grid_spec=pltpu.PrefetchScalarGridSpec(
            num_scalar_prefetch=0,
            grid=(N, nH),
            in_specs=[
                # full image block: fetched once per batch item, stays resident
                # while the h-tile axis sweeps it (halo rows come for free).
                pl.BlockSpec((1, H, W, Cin), lambda b, h: (b, 0, 0, 0)),
                pl.BlockSpec((Cin, Cmid), lambda b, h: (0, 0)),
                pl.BlockSpec((1, Cmid), lambda b, h: (0, 0)),
                pl.BlockSpec((K, K, Cmid), lambda b, h: (0, 0, 0)),
                pl.BlockSpec((1, Cmid), lambda b, h: (0, 0)),
            ],
            out_specs=pl.BlockSpec((1, TH, W, Cout), lambda b, h: (b, h, 0, 0)),
        ),
        compiler_params=pltpu.CompilerParams(
            dimension_semantics=("parallel", "parallel")),
    )(x_nhwc, w1s, b1, w2s, b2)


# -----------------------------------------------------------------------------
# Parameter construction (eval-mode BN folded into weights/bias)
# -----------------------------------------------------------------------------
def fold_bn(gamma, beta, mean, var, eps=1e-5):
    scale = gamma / jnp.sqrt(var + eps)
    bias = beta - mean * scale
    return scale.reshape(1, -1), bias.reshape(1, -1)


def make_ghost_params(key, input_channels, output_channels, kernel_size=1,
                      ratio=2, dw_size=3, dtype=jnp.float32):
    assert kernel_size == 1, "primary conv implemented as 1x1 (kernel_size=1)"
    assert ratio == 2, "channel mapping implemented for ratio=2"
    assert dw_size == 3, "depthwise halo handling implemented for dw_size=3"
    init_channels = output_channels // ratio          # matches the given spec (floor)
    new_channels = init_channels * (ratio - 1)
    ks = jax.random.split(key, 10)
    # primary conv weight: torch (Cmid, Cin, 1, 1) -> (Cin, Cmid)
    w1 = 0.1 * jax.random.normal(ks[0], (input_channels, init_channels), dtype)
    # depthwise weight: torch (Cnew, 1, K, K) -> (K, K, Cnew)
    w2 = 0.1 * jax.random.normal(ks[1], (dw_size, dw_size, new_channels), dtype)
    # BN params (deterministic synthetic running stats, eval-mode)
    g1 = 1.0 + 0.1 * jax.random.normal(ks[2], (init_channels,), dtype)
    b1 = 0.1 * jax.random.normal(ks[3], (init_channels,), dtype)
    m1 = 0.1 * jax.random.normal(ks[4], (init_channels,), dtype)
    v1 = jnp.abs(jax.random.normal(ks[5], (init_channels,), dtype)) + 0.5
    g2 = 1.0 + 0.1 * jax.random.normal(ks[6], (new_channels,), dtype)
    b2 = 0.1 * jax.random.normal(ks[7], (new_channels,), dtype)
    m2 = 0.1 * jax.random.normal(ks[8], (new_channels,), dtype)
    v2 = jnp.abs(jax.random.normal(ks[9], (new_channels,), dtype)) + 0.5
    s1, bb1 = fold_bn(g1, b1, m1, v1)
    s2, bb2 = fold_bn(g2, b2, m2, v2)
    # Fold BN scale into the conv weights (per output channel).
    w1s = w1 * s1                                  # (Cin, Cmid) * (1, Cmid)
    w2s = w2 * s2.reshape(1, 1, -1)                # (K, K, Cnew) * per-channel
    return dict(w1s=w1s, b1=bb1, w2s=w2s, b2=bb2,
                output_channels=output_channels)


# -----------------------------------------------------------------------------
# Forward wrappers
# -----------------------------------------------------------------------------
def ghost_module_forward(params, x_nchw, *, max_tile_rows=32):
    x = jnp.transpose(x_nchw, (0, 2, 3, 1))        # NCHW -> NHWC
    out = ghost_fused_nhwc(x, params["w1s"], params["b1"],
                           params["w2s"], params["b2"],
                           max_tile_rows=max_tile_rows)
    oc = params["output_channels"]
    if out.shape[-1] > oc:                         # no-op for ratio=2
        out = out[..., :oc]
    return jnp.transpose(out, (0, 3, 1, 2))        # NHWC -> NCHW


# pure-jnp reference (same folded-BN math, no Pallas) for a sanity check
def ghost_module_ref(params, x_nchw):
    x = jnp.transpose(x_nchw, (0, 2, 3, 1)).astype(jnp.float32)
    x1 = jnp.maximum(
        jnp.einsum("nhwc,cd->nhwd", x, params["w1s"]) + params["b1"], 0.0)
    K = params["w2s"].shape[0]
    H, W = x1.shape[1], x1.shape[2]
    pad = (K - 1) // 2
    xp = jnp.pad(x1, ((0, 0), (pad, pad), (pad, pad), (0, 0)))
    acc = jnp.zeros_like(x1)
    for ky in range(K):
        for kx in range(K):
            acc = acc + xp[:, ky:ky + H, kx:kx + W, :] * params["w2s"][ky, kx, :]
    x2 = jnp.maximum(acc + params["b2"], 0.0)
    out = jnp.concatenate([x1, x2], axis=-1)
    oc = params["output_channels"]
    if out.shape[-1] > oc:
        out = out[..., :oc]
    return jnp.transpose(out, (0, 3, 1, 2))


if __name__ == "__main__":
    key = jax.random.PRNGKey(0)
    kx, kp = jax.random.split(key)
    N, Cin, H, W = 2, 4, 16, 16
    Cout = 8
    x = jax.random.normal(kx, (N, Cin, H, W), jnp.float32)
    params = make_ghost_params(kp, Cin, Cout, kernel_size=1, ratio=2, dw_size=3)

    # Small row tile (TH=8 -> 2 spatial tiles per image) to exercise both the
    # interior-halo and image-boundary paths at toy sizes.
    fwd = jax.jit(functools.partial(ghost_module_forward, params,
                                    max_tile_rows=8))
    out = jax.block_until_ready(fwd(x))

    ref = ghost_module_ref(params, x)
    assert out.shape == (N, Cout, H, W), out.shape
    assert jnp.allclose(out, ref, atol=1e-4, rtol=1e-4), "mismatch vs reference"
    print("KERNEL_OK")
</pallas_src>

<mosaic_0001>
module attributes {stable_mosaic.version = 11 : i64} {
  func.func @_ghost_kernel(%arg0: i32, %arg1: i32, %arg2: memref<1x16x16x4xf32, #tpu.memory_space<vmem>>, %arg3: memref<4x4xf32, #tpu.memory_space<vmem>>, %arg4: memref<1x4xf32, #tpu.memory_space<vmem>>, %arg5: memref<3x3x4xf32, #tpu.memory_space<vmem>>, %arg6: memref<1x4xf32, #tpu.memory_space<vmem>>, %arg7: memref<1x8x16x8xf32, #tpu.memory_space<vmem>>) attributes {dimension_semantics = [#tpu.dimension_semantics<parallel>, #tpu.dimension_semantics<parallel>], iteration_bounds = array<i64: 2, 2>, scalar_prefetch = 0 : i64, scratch_operands = 0 : i64, tpu.core_type = #tpu.core_type<tc>, window_params = [{transform_indices = @transform_0, window_bounds = array<i64: 1, 16, 16, 4>}, {pipeline_mode = #tpu.pipeline_mode<synchronous>, transform_indices = @transform_1, window_bounds = array<i64: 4, 4>}, {pipeline_mode = #tpu.pipeline_mode<synchronous>, transform_indices = @transform_2, window_bounds = array<i64: 1, 4>}, {pipeline_mode = #tpu.pipeline_mode<synchronous>, transform_indices = @transform_3, window_bounds = array<i64: 3, 3, 4>}, {pipeline_mode = #tpu.pipeline_mode<synchronous>, transform_indices = @transform_4, window_bounds = array<i64: 1, 4>}, {transform_indices = @transform_5, window_bounds = array<i64: 1, 8, 16, 8>}]} {
    %c8_i32 = arith.constant 8 : i32
    %0 = arith.muli %arg1, %c8_i32 : i32
    %c1_i32 = arith.constant 1 : i32
    %1 = arith.subi %0, %c1_i32 : i32
    %c0_i32 = arith.constant 0 : i32
    %2 = arith.maxsi %1, %c0_i32 : i32
    %c0 = arith.constant 0 : index
    %3 = arith.index_cast %2 : i32 to index
    %c0_0 = arith.constant 0 : index
    %c0_1 = arith.constant 0 : index
    %4 = vector.load %arg2[%c0, %3, %c0_0, %c0_1] : memref<1x16x16x4xf32, #tpu.memory_space<vmem>>, vector<1x1x16x4xf32>
    %5 = vector.shape_cast %4 : vector<1x1x16x4xf32> to vector<1x16x4xf32>
    %c0_2 = arith.constant 0 : index
    %6 = arith.index_cast %0 : i32 to index
    %c0_3 = arith.constant 0 : index
    %c0_4 = arith.constant 0 : index
    %7 = vector.load %arg2[%c0_2, %6, %c0_3, %c0_4] : memref<1x16x16x4xf32, #tpu.memory_space<vmem>>, vector<1x8x16x4xf32>
    %8 = vector.shape_cast %7 : vector<1x8x16x4xf32> to vector<8x16x4xf32>
    %c8_i32_5 = arith.constant 8 : i32
    %9 = arith.addi %0, %c8_i32_5 : i32
    %c15_i32 = arith.constant 15 : i32
    %10 = arith.minsi %9, %c15_i32 : i32
    %c0_6 = arith.constant 0 : index
    %11 = arith.index_cast %10 : i32 to index
    %c0_7 = arith.constant 0 : index
    %c0_8 = arith.constant 0 : index
    %12 = vector.load %arg2[%c0_6, %11, %c0_7, %c0_8] : memref<1x16x16x4xf32, #tpu.memory_space<vmem>>, vector<1x1x16x4xf32>
    %13 = vector.shape_cast %12 : vector<1x1x16x4xf32> to vector<1x16x4xf32>
    %14 = tpu.concatenate %5, %8, %13 in 0 : vector<1x16x4xf32>, vector<8x16x4xf32>, vector<1x16x4xf32> -> vector<10x16x4xf32>
    %15 = vector.shape_cast %14 : vector<10x16x4xf32> to vector<160x4xf32>
    %c0_9 = arith.constant 0 : index
    %c0_10 = arith.constant 0 : index
    %16 = vector.load %arg3[%c0_9, %c0_10] : memref<4x4xf32, #tpu.memory_space<vmem>>, vector<4x4xf32>
    %cst = arith.constant dense<0.000000e+00> : vector<160x4xf32>
    %17 = tpu.matmul %15, %16, %cst {dimension_numbers = #tpu.dot_dimension_numbers<[1], [0], [0], [1], [0, 0, 1, 1], [], []>} : vector<160x4xf32>, vector<4x4xf32>, vector<160x4xf32> -> vector<160x4xf32>
    %c0_11 = arith.constant 0 : index
    %c0_12 = arith.constant 0 : index
    %18 = vector.load %arg4[%c0_11, %c0_12] : memref<1x4xf32, #tpu.memory_space<vmem>>, vector<1x4xf32>
    %19 = vector.broadcast %18 : vector<1x4xf32> to vector<160x4xf32>
    %20 = arith.addf %17, %19 : vector<160x4xf32>
    %cst_13 = arith.constant 0.000000e+00 : f32
    %21 = vector.broadcast %cst_13 : f32 to vector<160x4xf32>
    %22 = arith.maximumf %20, %21 : vector<160x4xf32>
    %23 = vector.shape_cast %22 : vector<160x4xf32> to vector<10x16x4xf32>
    %c1_i32_14 = arith.constant 1 : i32
    %24 = arith.subi %0, %c1_i32_14 : i32
    %25 = tpu.iota {dimensions = array<i32: 0>} : vector<10x1x1xi32>
    %26 = vector.broadcast %24 : i32 to vector<10x1x1xi32>
    %27 = arith.addi %26, %25 : vector<10x1x1xi32>
    %c0_i32_15 = arith.constant 0 : i32
    %28 = vector.broadcast %c0_i32_15 : i32 to vector<10x1x1xi32>
    %29 = arith.cmpi sge, %27, %28 : vector<10x1x1xi32>
    %c16_i32 = arith.constant 16 : i32
    %30 = vector.broadcast %c16_i32 : i32 to vector<10x1x1xi32>
    %31 = arith.cmpi slt, %27, %30 : vector<10x1x1xi32>
    %32 = arith.andi %29, %31 : vector<10x1x1xi1>
    %cst_16 = arith.constant 0.000000e+00 : f32
    %33 = vector.shape_cast %32 : vector<10x1x1xi1> to vector<10x1x1xi1>
    %34 = vector.broadcast %33 : vector<10x1x1xi1> to vector<10x16x4xi1>
    %35 = vector.broadcast %cst_16 : f32 to vector<10x16x4xf32>
    %36 = arith.select %34, %23, %35 : vector<10x16x4xi1>, vector<10x16x4xf32>
    %cst_17 = arith.constant 0.000000e+00 : f32
    %37 = vector.broadcast %cst_17 : f32 to vector<10x1x4xf32>
    %38 = tpu.concatenate %37, %36, %37 in 1 : vector<10x1x4xf32>, vector<10x16x4xf32>, vector<10x1x4xf32> -> vector<10x18x4xf32>
    %c0_18 = arith.constant 0 : index
    %c0_19 = arith.constant 0 : index
    %c0_20 = arith.constant 0 : index
    %39 = vector.load %arg5[%c0_18, %c0_19, %c0_20] : memref<3x3x4xf32, #tpu.memory_space<vmem>>, vector<3x3x4xf32>
    %cst_21 = arith.constant 0.000000e+00 : f32
    %40 = vector.broadcast %cst_21 : f32 to vector<8x16x4xf32>
    %41 = vector.extract_strided_slice %38 {offsets = [0, 0, 0], sizes = [8, 16, 4], strides = [1, 1, 1]} : vector<10x18x4xf32> to vector<8x16x4xf32>
    %42 = vector.extract_strided_slice %39 {offsets = [0, 0, 0], sizes = [1, 1, 4], strides = [1, 1, 1]} : vector<3x3x4xf32> to vector<1x1x4xf32>
    %43 = vector.shape_cast %42 : vector<1x1x4xf32> to vector<4xf32>
    %44 = vector.shape_cast %43 : vector<4xf32> to vector<1x1x4xf32>
    %45 = vector.broadcast %44 : vector<1x1x4xf32> to vector<8x16x4xf32>
    %46 = arith.mulf %41, %45 : vector<8x16x4xf32>
    %47 = arith.addf %40, %46 : vector<8x16x4xf32>
    %48 = vector.extract_strided_slice %38 {offsets = [0, 1, 0], sizes = [8, 16, 4], strides = [1, 1, 1]} : vector<10x18x4xf32> to vector<8x16x4xf32>
    %49 = vector.extract_strided_slice %39 {offsets = [0, 1, 0], sizes = [1, 1, 4], strides = [1, 1, 1]} : vector<3x3x4xf32> to vector<1x1x4xf32>
    %50 = vector.shape_cast %49 : vector<1x1x4xf32> to vector<4xf32>
    %51 = vector.shape_cast %50 : vector<4xf32> to vector<1x1x4xf32>
    %52 = vector.broadcast %51 : vector<1x1x4xf32> to vector<8x16x4xf32>
    %53 = arith.mulf %48, %52 : vector<8x16x4xf32>
    %54 = arith.addf %47, %53 : vector<8x16x4xf32>
    %55 = vector.extract_strided_slice %38 {offsets = [0, 2, 0], sizes = [8, 16, 4], strides = [1, 1, 1]} : vector<10x18x4xf32> to vector<8x16x4xf32>
    %56 = vector.extract_strided_slice %39 {offsets = [0, 2, 0], sizes = [1, 1, 4], strides = [1, 1, 1]} : vector<3x3x4xf32> to vector<1x1x4xf32>
    %57 = vector.shape_cast %56 : vector<1x1x4xf32> to vector<4xf32>
    %58 = vector.shape_cast %57 : vector<4xf32> to vector<1x1x4xf32>
    %59 = vector.broadcast %58 : vector<1x1x4xf32> to vector<8x16x4xf32>
    %60 = arith.mulf %55, %59 : vector<8x16x4xf32>
    %61 = arith.addf %54, %60 : vector<8x16x4xf32>
    %62 = vector.extract_strided_slice %38 {offsets = [1, 0, 0], sizes = [8, 16, 4], strides = [1, 1, 1]} : vector<10x18x4xf32> to vector<8x16x4xf32>
    %63 = vector.extract_strided_slice %39 {offsets = [1, 0, 0], sizes = [1, 1, 4], strides = [1, 1, 1]} : vector<3x3x4xf32> to vector<1x1x4xf32>
    %64 = vector.shape_cast %63 : vector<1x1x4xf32> to vector<4xf32>
    %65 = vector.shape_cast %64 : vector<4xf32> to vector<1x1x4xf32>
    %66 = vector.broadcast %65 : vector<1x1x4xf32> to vector<8x16x4xf32>
    %67 = arith.mulf %62, %66 : vector<8x16x4xf32>
    %68 = arith.addf %61, %67 : vector<8x16x4xf32>
    %69 = vector.extract_strided_slice %38 {offsets = [1, 1, 0], sizes = [8, 16, 4], strides = [1, 1, 1]} : vector<10x18x4xf32> to vector<8x16x4xf32>
    %70 = vector.extract_strided_slice %39 {offsets = [1, 1, 0], sizes = [1, 1, 4], strides = [1, 1, 1]} : vector<3x3x4xf32> to vector<1x1x4xf32>
    %71 = vector.shape_cast %70 : vector<1x1x4xf32> to vector<4xf32>
    %72 = vector.shape_cast %71 : vector<4xf32> to vector<1x1x4xf32>
    %73 = vector.broadcast %72 : vector<1x1x4xf32> to vector<8x16x4xf32>
    %74 = arith.mulf %69, %73 : vector<8x16x4xf32>
    %75 = arith.addf %68, %74 : vector<8x16x4xf32>
    %76 = vector.extract_strided_slice %38 {offsets = [1, 2, 0], sizes = [8, 16, 4], strides = [1, 1, 1]} : vector<10x18x4xf32> to vector<8x16x4xf32>
    %77 = vector.extract_strided_slice %39 {offsets = [1, 2, 0], sizes = [1, 1, 4], strides = [1, 1, 1]} : vector<3x3x4xf32> to vector<1x1x4xf32>
    %78 = vector.shape_cast %77 : vector<1x1x4xf32> to vector<4xf32>
    %79 = vector.shape_cast %78 : vector<4xf32> to vector<1x1x4xf32>
    %80 = vector.broadcast %79 : vector<1x1x4xf32> to vector<8x16x4xf32>
    %81 = arith.mulf %76, %80 : vector<8x16x4xf32>
    %82 = arith.addf %75, %81 : vector<8x16x4xf32>
    %83 = vector.extract_strided_slice %38 {offsets = [2, 0, 0], sizes = [8, 16, 4], strides = [1, 1, 1]} : vector<10x18x4xf32> to vector<8x16x4xf32>
    %84 = vector.extract_strided_slice %39 {offsets = [2, 0, 0], sizes = [1, 1, 4], strides = [1, 1, 1]} : vector<3x3x4xf32> to vector<1x1x4xf32>
    %85 = vector.shape_cast %84 : vector<1x1x4xf32> to vector<4xf32>
    %86 = vector.shape_cast %85 : vector<4xf32> to vector<1x1x4xf32>
    %87 = vector.broadcast %86 : vector<1x1x4xf32> to vector<8x16x4xf32>
    %88 = arith.mulf %83, %87 : vector<8x16x4xf32>
    %89 = arith.addf %82, %88 : vector<8x16x4xf32>
    %90 = vector.extract_strided_slice %38 {offsets = [2, 1, 0], sizes = [8, 16, 4], strides = [1, 1, 1]} : vector<10x18x4xf32> to vector<8x16x4xf32>
    %91 = vector.extract_strided_slice %39 {offsets = [2, 1, 0], sizes = [1, 1, 4], strides = [1, 1, 1]} : vector<3x3x4xf32> to vector<1x1x4xf32>
    %92 = vector.shape_cast %91 : vector<1x1x4xf32> to vector<4xf32>
    %93 = vector.shape_cast %92 : vector<4xf32> to vector<1x1x4xf32>
    %94 = vector.broadcast %93 : vector<1x1x4xf32> to vector<8x16x4xf32>
    %95 = arith.mulf %90, %94 : vector<8x16x4xf32>
    %96 = arith.addf %89, %95 : vector<8x16x4xf32>
    %97 = vector.extract_strided_slice %38 {offsets = [2, 2, 0], sizes = [8, 16, 4], strides = [1, 1, 1]} : vector<10x18x4xf32> to vector<8x16x4xf32>
    %98 = vector.extract_strided_slice %39 {offsets = [2, 2, 0], sizes = [1, 1, 4], strides = [1, 1, 1]} : vector<3x3x4xf32> to vector<1x1x4xf32>
    %99 = vector.shape_cast %98 : vector<1x1x4xf32> to vector<4xf32>
    %100 = vector.shape_cast %99 : vector<4xf32> to vector<1x1x4xf32>
    %101 = vector.broadcast %100 : vector<1x1x4xf32> to vector<8x16x4xf32>
    %102 = arith.mulf %97, %101 : vector<8x16x4xf32>
    %103 = arith.addf %96, %102 : vector<8x16x4xf32>
    %c0_22 = arith.constant 0 : index
    %c0_23 = arith.constant 0 : index
    %104 = vector.load %arg6[%c0_22, %c0_23] : memref<1x4xf32, #tpu.memory_space<vmem>>, vector<1x4xf32>
    %105 = vector.shape_cast %104 : vector<1x4xf32> to vector<1x1x4xf32>
    %106 = vector.broadcast %105 : vector<1x1x4xf32> to vector<8x16x4xf32>
    %107 = arith.addf %103, %106 : vector<8x16x4xf32>
    %cst_24 = arith.constant 0.000000e+00 : f32
    %108 = vector.broadcast %cst_24 : f32 to vector<8x16x4xf32>
    %109 = arith.maximumf %107, %108 : vector<8x16x4xf32>
    %110 = vector.extract_strided_slice %36 {offsets = [1, 0, 0], sizes = [8, 16, 4], strides = [1, 1, 1]} : vector<10x16x4xf32> to vector<8x16x4xf32>
    %111 = tpu.concatenate %110, %109 in 2 : vector<8x16x4xf32>, vector<8x16x4xf32> -> vector<8x16x8xf32>
    %c0_25 = arith.constant 0 : index
    %c0_26 = arith.constant 0 : index
    %c0_27 = arith.constant 0 : index
    %c0_28 = arith.constant 0 : index
    %112 = vector.load %arg7[%c0_25, %c0_26, %c0_27, %c0_28] : memref<1x8x16x8xf32, #tpu.memory_space<vmem>>, vector<1x8x16x8xf32>
    %113 = vector.shape_cast %112 : vector<1x8x16x8xf32> to vector<8x16x8xf32>
    %114 = vector.shape_cast %111 : vector<8x16x8xf32> to vector<1x8x16x8xf32>
    tpu.vector_store %arg7[%c0_25, %c0_26, %c0_27, %c0_28], %114 {strides = array<i32>} : memref<1x8x16x8xf32, #tpu.memory_space<vmem>>, vector<1x8x16x8xf32>,
    return
  }
  func.func @transform_0(%arg0: i32, %arg1: i32) -> (i32, i32, i32, i32) {
    %c0_i32 = arith.constant 0 : i32
    %c0_i32_0 = arith.constant 0 : i32
    %c0_i32_1 = arith.constant 0 : i32
    %c0_i32_2 = arith.constant 0 : i32
    return %arg0, %c0_i32, %c0_i32_0, %c0_i32_1 : i32, i32, i32, i32
  }
  func.func @transform_1(%arg0: i32, %arg1: i32) -> (i32, i32) {
    %c0_i32 = arith.constant 0 : i32
    %c0_i32_0 = arith.constant 0 : i32
    %c0_i32_1 = arith.constant 0 : i32
    return %c0_i32, %c0_i32_0 : i32, i32
  }
  func.func @transform_2(%arg0: i32, %arg1: i32) -> (i32, i32) {
    %c0_i32 = arith.constant 0 : i32
    %c0_i32_0 = arith.constant 0 : i32
    %c0_i32_1 = arith.constant 0 : i32
    return %c0_i32, %c0_i32_0 : i32, i32
  }
  func.func @transform_3(%arg0: i32, %arg1: i32) -> (i32, i32, i32) {
    %c0_i32 = arith.constant 0 : i32
    %c0_i32_0 = arith.constant 0 : i32
    %c0_i32_1 = arith.constant 0 : i32
    %c0_i32_2 = arith.constant 0 : i32
    return %c0_i32, %c0_i32_0, %c0_i32_1 : i32, i32, i32
  }
  func.func @transform_4(%arg0: i32, %arg1: i32) -> (i32, i32) {
    %c0_i32 = arith.constant 0 : i32
    %c0_i32_0 = arith.constant 0 : i32
    %c0_i32_1 = arith.constant 0 : i32
    return %c0_i32, %c0_i32_0 : i32, i32
  }
  func.func @transform_5(%arg0: i32, %arg1: i32) -> (i32, i32, i32, i32) {
    %c0_i32 = arith.constant 0 : i32
    %c0_i32_0 = arith.constant 0 : i32
    %c0_i32_1 = arith.constant 0 : i32
    return %arg0, %arg1, %c0_i32, %c0_i32_0 : i32, i32, i32, i32
  }
}

</mosaic_0001>

<llo_original>
// kernel: ghost_module_forward.1
$region0: #{ghost_module_forward.1}
  #allocation0 [shape = 'u32[]', space=smem, size = 0x4, offset = 0x4, fixed_abs, tag = 'smem constant byte address 0x4 - core index']
  #allocation1 [shape = 'u32[144,128]{1,0:T(1,128)}', space=vmem, size = 0x12000, scoped, tag = 'internal scratch']
  %s0 = inlined_call_operand.vmem [shape: f32[2,16,16,4], index: 0, kind: input, shape index: {}]
  %s1 = inlined_call_operand.vmem [shape: f32[4,4], index: 1, kind: input, shape index: {}]
  %s2 = inlined_call_operand.vmem [shape: f32[1,4], index: 2, kind: input, shape index: {}]
  %s3 = inlined_call_operand.vmem [shape: f32[3,3,4], index: 3, kind: input, shape index: {}]
  %s4 = inlined_call_operand.vmem [shape: f32[1,4], index: 4, kind: input, shape index: {}]
  %s5 = inlined_call_operand.vmem [shape: f32[2,16,16,8], index: 5, kind: output, shape index: {}]
  %s6 = sld [smem:[#allocation0]]
  $region53: #{ghost_module_forward.1} parent=0
    _
  %s8 = ssub.s32 1, %s6
  %s9 = scalar_select 0, %s8, %s6
  loop: start=0, step=1, limit=6
  $region2: #{ghost_module_forward.1} parent=0 // loop_pre_header
    _
  $region3: #{ghost_module_forward.1} parent=0 // loop_header
    %s11 = sphi 0, %s15
    %p12 = scmp.ge.s32.totalorder %s11, 6
    %s18 = sphi 0, %s30
    %s19 = sphi 0, %s26
    %s20 = sphi 0, %s18
    %s21 = sphi 0, %s19
    %s22 = sphi 0, %s20
    %s23 = sphi 0, %s21
    %s33 = sphi 0, %s35
    %s36 = sphi 0, %s33
    %s37 = sphi 0, %s36
    %s53 = sphi 0, %s37
    %s57 = sphi 0, %s57
    %s59 = sphi 0, %s57
    %s60 = sphi 0, %s59
    %s74 = sphi 0, %s60
    %s78 = sphi 0, %s78
    %s80 = sphi 0, %s78
    %s81 = sphi 0, %s80
    %s95 = sphi 0, %s81
    %s99 = sphi 0, %s99
    %s101 = sphi 0, %s99
    %s102 = sphi 0, %s101
    %s116 = sphi 0, %s102
    %s120 = sphi 0, %s120
    %s122 = sphi 0, %s120
    %s123 = sphi 0, %s122
    %s137 = sphi 0, %s123
    %s145 = sphi 0, %s147
    %s148 = sphi 0, %s145
    %s149 = sphi 0, %s148
    %s165 = sphi 0, %s149
  $region4: #{ghost_module_forward.1} parent=0 // loop_header_branch
    %14 = sbr.rel (%p12) target = $region8
  $region5: #{ghost_module_forward.1} parent=0 // loop_body
    %s16 = ssub.s32 %s11, 1
    %s17 = ssub.s32 %s11, 2
    %s24 = sadd.s32 1, %s19
    %p25 = scmp.ge.s32.totalorder %s24, 2
    %s26 = scalar_select %p25, 0, %s24
    %s27 = sadd.s32 1, %s18
    %s28 = scalar_select %p25, %s27, %s18
    %p29 = scmp.ge.s32.totalorder %s28, 2
    %s30 = scalar_select %p29, 0, %s28
    %s31 = ssub.s32 %s18, %s30
    %p32 = scmp.eq.s32.totalorder %s31, 0
    %s34 = sadd.s32 %s33, 1
    %s35 = scalar_select %p32, %s33, %s34
    %p38 = pneg %p32
    %p39 = scmp.eq.s32.totalorder %s11, 3
    %p40 = por %p38, %p39
    %p41 = scmp.ne.s32.totalorder %s33, %s36
    %p42 = scmp.eq.s32.totalorder %s11, 0
    %p43 = por %p41, %p42
    %p44 = scmp.ne.s32.totalorder %s33, %s36
    %p45 = scmp.eq.s32.totalorder %s16, 3
    %p46 = por %p44, %p45
    %p47 = scmp.ne.s32.totalorder %s36, %s37
    %p48 = scmp.eq.s32.totalorder %s16, 0
    %p49 = por %p47, %p48
    %p50 = scmp.ne.s32.totalorder %s36, %s37
    %p51 = scmp.eq.s32.totalorder %s17, 3
    %p52 = por %p50, %p51
    %p54 = scmp.ne.s32.totalorder %s37, %s53
    %p55 = scmp.eq.s32.totalorder %s17, 0
    %p56 = por %p54, %p55
    %s58 = sadd.s32 %s57, 1
    %p61 = scmp.eq.s32.totalorder %s11, 3
    %p62 = scmp.ne.s32.totalorder %s57, %s59
    %p63 = scmp.eq.s32.totalorder %s11, 0
    %p64 = por %p62, %p63
    %p65 = scmp.ne.s32.totalorder %s57, %s59
    %p66 = scmp.eq.s32.totalorder %s16, 3
    %p67 = por %p65, %p66
    %p68 = scmp.ne.s32.totalorder %s59, %s60
    %p69 = scmp.eq.s32.totalorder %s16, 0
    %p70 = por %p68, %p69
    %p71 = scmp.ne.s32.totalorder %s59, %s60
    %p72 = scmp.eq.s32.totalorder %s17, 3
    %p73 = por %p71, %p72
    %p75 = scmp.ne.s32.totalorder %s60, %s74
    %p76 = scmp.eq.s32.totalorder %s17, 0
    %p77 = por %p75, %p76
    %s79 = sadd.s32 %s78, 1
    %p82 = scmp.eq.s32.totalorder %s11, 3
    %p83 = scmp.ne.s32.totalorder %s78, %s80
    %p84 = scmp.eq.s32.totalorder %s11, 0
    %p85 = por %p83, %p84
    %p86 = scmp.ne.s32.totalorder %s78, %s80
    %p87 = scmp.eq.s32.totalorder %s16, 3
    %p88 = por %p86, %p87
    %p89 = scmp.ne.s32.totalorder %s80, %s81
    %p90 = scmp.eq.s32.totalorder %s16, 0
    %p91 = por %p89, %p90
    %p92 = scmp.ne.s32.totalorder %s80, %s81
    %p93 = scmp.eq.s32.totalorder %s17, 3
    %p94 = por %p92, %p93
    %p96 = scmp.ne.s32.totalorder %s81, %s95
    %p97 = scmp.eq.s32.totalorder %s17, 0
    %p98 = por %p96, %p97
    %s100 = sadd.s32 %s99, 1
    %p103 = scmp.eq.s32.totalorder %s11, 3
    %p104 = scmp.ne.s32.totalorder %s99, %s101
    %p105 = scmp.eq.s32.totalorder %s11, 0
    %p106 = por %p104, %p105
    %p107 = scmp.ne.s32.totalorder %s99, %s101
    %p108 = scmp.eq.s32.totalorder %s16, 3
    %p109 = por %p107, %p108
    %p110 = scmp.ne.s32.totalorder %s101, %s102
    %p111 = scmp.eq.s32.totalorder %s16, 0
    %p112 = por %p110, %p111
    %p113 = scmp.ne.s32.totalorder %s101, %s102
    %p114 = scmp.eq.s32.totalorder %s17, 3
    %p115 = por %p113, %p114
    %p117 = scmp.ne.s32.totalorder %s102, %s116
    %p118 = scmp.eq.s32.totalorder %s17, 0
    %p119 = por %p117, %p118
    %s121 = sadd.s32 %s120, 1
    %p124 = scmp.eq.s32.totalorder %s11, 3
    %p125 = scmp.ne.s32.totalorder %s120, %s122
    %p126 = scmp.eq.s32.totalorder %s11, 0
    %p127 = por %p125, %p126
    %p128 = scmp.ne.s32.totalorder %s120, %s122
    %p129 = scmp.eq.s32.totalorder %s16, 3
    %p130 = por %p128, %p129
    %p131 = scmp.ne.s32.totalorder %s122, %s123
    %p132 = scmp.eq.s32.totalorder %s16, 0
    %p133 = por %p131, %p132
    %p134 = scmp.ne.s32.totalorder %s122, %s123
    %p135 = scmp.eq.s32.totalorder %s17, 3
    %p136 = por %p134, %p135
    %p138 = scmp.ne.s32.totalorder %s123, %s137
    %p139 = scmp.eq.s32.totalorder %s17, 0
    %p140 = por %p138, %p139
    %s141 = ssub.s32 %s18, %s30
    %s142 = ssub.s32 %s19, %s26
    %s143 = sor.u32 %s141, %s142
    %p144 = scmp.eq.s32.totalorder %s143, 0
    %s146 = sadd.s32 %s145, 1
    %s147 = scalar_select %p144, %s145, %s146
    %p150 = pneg %p144
    %p151 = scmp.eq.s32.totalorder %s11, 3
    %p152 = por %p150, %p151
    %p153 = scmp.ne.s32.totalorder %s145, %s148
    %p154 = scmp.eq.s32.totalorder %s11, 0
    %p155 = por %p153, %p154
    %p156 = scmp.ne.s32.totalorder %s145, %s148
    %p157 = scmp.eq.s32.totalorder %s16, 3
    %p158 = por %p156, %p157
    %p159 = scmp.ne.s32.totalorder %s148, %s149
    %p160 = scmp.eq.s32.totalorder %s16, 0
    %p161 = por %p159, %p160
    %p162 = scmp.ne.s32.totalorder %s148, %s149
    %p163 = scmp.eq.s32.totalorder %s17, 3
    %p164 = por %p162, %p163
    %p166 = scmp.ne.s32.totalorder %s149, %s165
    %p167 = scmp.eq.s32.totalorder %s17, 0
    %p168 = por %p166, %p167
    %p169 = scmp.le.s32.totalorder 1, %s11
    %p170 = scmp.lt.s32.totalorder %s11, 5
    %p171 = pnand %p169, %p170
    %p172 = pneg %p171
    // Predicated region
    $region9: #{ghost_module_forward.1} parent=5 // pred_check
      _
    $region10: #{ghost_module_forward.1} parent=5 // pred_check_branch
      %174 = sbr.rel (%p171) target = $region12
    $region11: #{ghost_module_forward.1} parent=5 // pred_region
      %s175 = ssub.s32 %s11, 1
      // Predicated region
      $region13: #{ghost_module_forward.1} parent=11 // pred_check
        %p176 = pneg %p70
      $region14: #{ghost_module_forward.1} parent=11 // pred_check_branch
        %178 = sbr.rel (%p176) target = $region16
      $region15: #{ghost_module_forward.1} parent=11 // pred_region
        _
      $region16: #{ghost_module_forward.1} parent=11 // pred_fallthru
        _
      // Predicated region
      $region17: #{ghost_module_forward.1} parent=11 // pred_check
        %p179 = pneg %p91
      $region18: #{ghost_module_forward.1} parent=11 // pred_check_branch
        %181 = sbr.rel (%p179) target = $region20
      $region19: #{ghost_module_forward.1} parent=11 // pred_region
        _
      $region20: #{ghost_module_forward.1} parent=11 // pred_fallthru
        _
      // Predicated region
      $region21: #{ghost_module_forward.1} parent=11 // pred_check
        %p182 = pneg %p112
      $region22: #{ghost_module_forward.1} parent=11 // pred_check_branch
        %184 = sbr.rel (%p182) target = $region24
      $region23: #{ghost_module_forward.1} parent=11 // pred_region
        _
      $region24: #{ghost_module_forward.1} parent=11 // pred_fallthru
        _
      // Predicated region
      $region25: #{ghost_module_forward.1} parent=11 // pred_check
        %p185 = pneg %p133
      $region26: #{ghost_module_forward.1} parent=11 // pred_check_branch
        %187 = sbr.rel (%p185) target = $region28
      $region27: #{ghost_module_forward.1} parent=11 // pred_region
        _
      $region28: #{ghost_module_forward.1} parent=11 // pred_fallthru
        _
    $region12: #{ghost_module_forward.1} parent=5 // pred_fallthru
      _
    %p188 = scmp.lt.s32.totalorder %s11, 4
    // Predicated region
    $region29: #{ghost_module_forward.1} parent=5 // pred_check
      %p189 = pneg %p188
    $region30: #{ghost_module_forward.1} parent=5 // pred_check_branch
      %191 = sbr.rel (%p189) target = $region32
    $region31: #{ghost_module_forward.1} parent=5 // pred_region
      // Predicated region
      $region33: #{ghost_module_forward.1} parent=31 // pred_check
        %p192 = pneg %p43
      $region34: #{ghost_module_forward.1} parent=31 // pred_check_branch
        %194 = sbr.rel (%p192) target = $region36
      $region35: #{ghost_module_forward.1} parent=31 // pred_region
        %p195 = scmp.lt.s32.totalorder %s18, 1
        %s196 = scalar_select %p195, %s18, 1
        %s197 = smul.addr %s196, 32
        %s198 = smul.addr %s197, 8
        %s199 = scalar_lea.vmem %s0, %s198
      $region36: #{ghost_module_forward.1} parent=31 // pred_fallthru
        _
    $region32: #{ghost_module_forward.1} parent=5 // pred_fallthru
      _
    %p200 = scmp.le.s32.totalorder 1, %s11
    %p201 = scmp.lt.s32.totalorder %s11, 5
    %p202 = pnand %p200, %p201
    %p203 = pneg %p202
    // Predicated region
    $region37: #{ghost_module_forward.1} parent=5 // pred_check
      _
    $region38: #{ghost_module_forward.1} parent=5 // pred_check_branch
      %205 = sbr.rel (%p202) target = $region40
    $region39: #{ghost_module_forward.1} parent=5 // pred_region
      %s206 = ssub.s32 %s11, 1
      %p207 = scmp.lt.s32.totalorder %s20, 1
      %s208 = scalar_select %p207, %s20, 1
      %s209 = smul.addr %s208, 32
      %s210 = smul.addr %s209, 8
      %s211 = scalar_lea.vmem %s0, %s210
      %p212 = pneg %p49
      %p213 = pneg %p46
      %p214 = pneg %p70
      %p215 = pneg %p67
      %p216 = pneg %p91
      %p217 = pneg %p88
      %p218 = pneg %p112
      %p219 = pneg %p109
      %p220 = pneg %p133
      %p221 = pneg %p130
      %p222 = pneg %p161
      %p223 = pneg %p158
      %s224 = smul.u32 8, %s21
      %p225 = scmp.lt.s32.totalorder %s20, 1
      %s226 = scalar_select %p225, %s20, 1
      %p227 = scmp.lt.s32.totalorder %s224, 15
      %s228 = scalar_select %p227, %s224, 15
      %s229 = smul.addr %s228, 2
      %s230 = smul.addr %s226, 32
      %s231 = sadd.s32 %s229, %s230
      %s232 = smul.addr %s231, 8
      %s233 = scalar_lea.vmem %s5, %s232
      %p234 = scmp.lt.s32.totalorder %s20, 1
      %s235 = scalar_select %p234, %s20, 1
      %s236 = smul.addr %s235, 32
      %s237 = smul.addr %s236, 8
      %s238 = scalar_lea.vmem %s0, %s237
      %s239 = smul.u32 8, %s21
      %p240 = scmp.lt.s32.totalorder %s20, 1
      %s241 = scalar_select %p240, %s20, 1
      %p242 = scmp.lt.s32.totalorder %s239, 15
      %s243 = scalar_select %p242, %s239, 15
      %s244 = smul.addr %s243, 2
      %s245 = smul.addr %s241, 32
      %s246 = sadd.s32 %s244, %s245
      %s247 = smul.addr %s246, 8
      %s248 = scalar_lea.vmem %s5, %s247
      %s249 = smul.u32 8, %s21
      %s250 = smul.u32 %s21, 8
      %s251 = ssub.s32 %s250, 1
      %p252 = scmp.gt.s32.totalorder %s251, 0
      %s253 = scalar_select %p252, %s251, 0
      %s254 = smul.u32 %s253, 16
      %s255 = scalar_lea.vmem %s238, %s254
      %v256 = vld [vmem:[%s255] sm:$0xff]
      %v257 = vld [vmem:[%s255 + $0x8] sm:$0xff]
      %s258 = smul.u32 %s250, 16
      %s259 = scalar_lea.vmem %s238, %s258
      %v260 = vld [vmem:[%s259] sm:$0xff]
      %v261 = vld [vmem:[%s259 + $0x8] sm:$0xff]
      %v262 = vld [vmem:[%s259 + $0x10] sm:$0xff]
      %v263 = vld [vmem:[%s259 + $0x18] sm:$0xff]
      %v264 = vld [vmem:[%s259 + $0x20] sm:$0xff]
      %v265 = vld [vmem:[%s259 + $0x28] sm:$0xff]
      %v266 = vld [vmem:[%s259 + $0x30] sm:$0xff]
      %v267 = vld [vmem:[%s259 + $0x38] sm:$0xff]
      %v268 = vld [vmem:[%s259 + $0x40] sm:$0xff]
      %v269 = vld [vmem:[%s259 + $0x48] sm:$0xff]
      %v270 = vld [vmem:[%s259 + $0x50] sm:$0xff]
      %v271 = vld [vmem:[%s259 + $0x58] sm:$0xff]
      %v272 = vld [vmem:[%s259 + $0x60] sm:$0xff]
      %v273 = vld [vmem:[%s259 + $0x68] sm:$0xff]
      %v274 = vld [vmem:[%s259 + $0x70] sm:$0xff]
      %v275 = vld [vmem:[%s259 + $0x78] sm:$0xff]
      %s276 = sadd.s32 %s250, 8
      %p277 = scmp.lt.s32.totalorder %s276, 15
      %s278 = scalar_select %p277, %s276, 15
      %s279 = smul.u32 %s278, 16
      %s280 = scalar_lea.vmem %s238, %s279
      %v281 = vld [vmem:[%s280] sm:$0xff]
      %v282 = vld [vmem:[%s280 + $0x8] sm:$0xff]
      %v283 = vld [vmem:[%s1] sm:$0xf]
      %v284 = vld [vmem:[%s2] sm:$0x1]
      %v286 = vlaneseq
      %v287 = vshrl.u32 %v286, 7
      %v288 = vsub.s32 0, %v287
      %v289 = vrot.slane %v284, %v288
      %vm291 = vcmask 31744
      %v293 = vsel %vm291, %v256, 0
      %v296 = vsel %vm291, %v257, 0
      %v299 = vsel %vm291, %v260, 0
      %v302 = vsel %vm291, %v261, 0
      %v305 = vsel %vm291, %v262, 0
      %v308 = vsel %vm291, %v263, 0
      %v311 = vsel %vm291, %v264, 0
      %v314 = vsel %vm291, %v265, 0
      %v317 = vsel %vm291, %v266, 0
      %v320 = vsel %vm291, %v267, 0
      %v323 = vsel %vm291, %v268, 0
      %v326 = vsel %vm291, %v269, 0
      %v329 = vsel %vm291, %v270, 0
      %v332 = vsel %vm291, %v271, 0
      %v335 = vsel %vm291, %v272, 0
      %v338 = vsel %vm291, %v273, 0
      %v341 = vsel %vm291, %v274, 0
      %v344 = vsel %vm291, %v275, 0
      %v347 = vsel %vm291, %v281, 0
      %v350 = vsel %vm291, %v282, 0
      %vm352 = vcmask 1043456
      %v354 = vsel %vm352, %v283, 0
      %356 = vmatprep.subr.mxu0 0.0
      %357 = vmatpush1.msra.mxu0 %v354
      %358 = vmatprep.subr.mxu0 0.0
      %359 = vmatpush1.msra.mxu0 0.0
      %360 = vmatprep.subr.mxu0 0.0
      %361 = vmatpush1.msra.mxu0 0.0
      %362 = vmatprep.subr.mxu0 0.0
      %363 = vmatpush1.msra.mxu0 0.0
      %364 = vmatprep.subr.mxu0 0.0
      %365 = vmatpush1.msra.mxu0 0.0
      %366 = vmatprep.subr.mxu0 0.0
      %367 = vmatpush1.msra.mxu0 0.0
      %368 = vmatprep.subr.mxu0 0.0
      %369 = vmatpush1.msra.mxu0 0.0
      %370 = vmatprep.subr.mxu0 0.0
      %371 = vmatpush1.msra.mxu0 0.0
      %372 = vmatprep.subr.mxu0 0.0
      %373 = vmatpush1.msra.mxu0 0.0
      %374 = vmatprep.subr.mxu0 0.0
      %375 = vmatpush1.msra.mxu0 0.0
      %376 = vmatprep.subr.mxu0 0.0
      %377 = vmatpush1.msra.mxu0 0.0
      %378 = vmatprep.subr.mxu0 0.0
      %379 = vmatpush1.msra.mxu0 0.0
      %380 = vmatprep.subr.mxu0 0.0
      %381 = vmatpush1.msra.mxu0 0.0
      %382 = vmatprep.subr.mxu0 0.0
      %383 = vmatpush1.msra.mxu0 0.0
      %384 = vmatprep.subr.mxu0 0.0
      %385 = vmatpush1.msra.mxu0 0.0
      %386 = vmatprep.subr.mxu0 0.0
      %387 = vmatpush1.msra.mxu0 0.0
      %388 = vmatprep.subr.mxu0 0.0
      %389 = vmatpush1.msra.mxu0 0.0
      %390 = vmatprep.subr.mxu0 0.0
      %391 = vmatpush1.msra.mxu0 0.0
      %392 = vmatprep.subr.mxu0 0.0
      %393 = vmatpush1.msra.mxu0 0.0
      %394 = vmatprep.subr.mxu0 0.0
      %395 = vmatpush1.msra.mxu0 0.0
      %396 = vmatprep.subr.mxu0 0.0
      %397 = vmatpush1.msra.mxu0 0.0
      %398 = vmatprep.subr.mxu0 0.0
      %399 = vmatpush1.msra.mxu0 0.0
      %400 = vmatprep.subr.mxu0 0.0
      %401 = vmatpush1.msra.mxu0 0.0
      %402 = vmatprep.subr.mxu0 0.0
      %403 = vmatpush1.msra.mxu0 0.0
      %404 = vmatprep.subr.mxu0 0.0
      %405 = vmatpush1.msra.mxu0 0.0
      %406 = vmatprep.subr.mxu0 0.0
      %407 = vmatpush1.msra.mxu0 0.0
      %408 = vmatprep.subr.mxu0 0.0
      %409 = vmatpush1.msra.mxu0 0.0
      %410 = vmatprep.subr.mxu0 0.0
      %411 = vmatpush1.msra.mxu0 0.0
      %412 = vmatprep.subr.mxu0 0.0
      %413 = vmatpush1.msra.mxu0 0.0
      %414 = vmatprep.subr.mxu0 0.0
      %415 = vmatpush1.msra.mxu0 0.0
      %416 = vmatprep.subr.mxu0 0.0
      %417 = vmatpush1.msra.mxu0 0.0
      %418 = vmatprep.subr.mxu0 0.0
      %419 = vmatpush1.msra.mxu0 0.0
      %420 = vmatprep.mubr.f32.mxu0 0.0
      %421 = vmatmul.mubr.f32.gmra.mrb[0].mxu0 %v293
      %v422 = vpop.f32.mrb[0].mxu0
      %v423 = vadd.f32 %v289, %v422
      %v424 = vpop.f32.mrb[0].mxu0
      %425 = vmatprep.mubr.f32.mxu0 0.0
      %426 = vmatmul.mubr.f32.gmra.mrb[0].mxu0 %v296
      %v427 = vpop.f32.mrb[0].mxu0
      %v428 = vadd.f32 %v289, %v427
      %v429 = vpop.f32.mrb[0].mxu0
      %430 = vmatprep.mubr.f32.mxu0 0.0
      %431 = vmatmul.mubr.f32.gmra.mrb[0].mxu0 %v299
      %v432 = vpop.f32.mrb[0].mxu0
      %v433 = vadd.f32 %v289, %v432
      %v434 = vpop.f32.mrb[0].mxu0
      %435 = vmatprep.mubr.f32.mxu0 0.0
      %436 = vmatmul.mubr.f32.gmra.mrb[0].mxu0 %v302
      %v437 = vpop.f32.mrb[0].mxu0
      %v438 = vadd.f32 %v289, %v437
      %v439 = vpop.f32.mrb[0].mxu0
      %440 = vmatprep.mubr.f32.mxu0 0.0
      %441 = vmatmul.mubr.f32.gmra.mrb[0].mxu0 %v305
      %v442 = vpop.f32.mrb[0].mxu0
      %v443 = vadd.f32 %v289, %v442
      %v444 = vpop.f32.mrb[0].mxu0
      %445 = vmatprep.mubr.f32.mxu0 0.0
      %446 = vmatmul.mubr.f32.gmra.mrb[0].mxu0 %v308
      %v447 = vpop.f32.mrb[0].mxu0
      %v448 = vadd.f32 %v289, %v447
      %v449 = vpop.f32.mrb[0].mxu0
      %450 = vmatprep.mubr.f32.mxu0 0.0
      %451 = vmatmul.mubr.f32.gmra.mrb[0].mxu0 %v311
      %v452 = vpop.f32.mrb[0].mxu0
      %v453 = vadd.f32 %v289, %v452
      %v454 = vpop.f32.mrb[0].mxu0
      %455 = vmatprep.mubr.f32.mxu0 0.0
      %456 = vmatmul.mubr.f32.gmra.mrb[0].mxu0 %v314
      %v457 = vpop.f32.mrb[0].mxu0
      %v458 = vadd.f32 %v289, %v457
      %v459 = vpop.f32.mrb[0].mxu0
      %460 = vmatprep.mubr.f32.mxu0 0.0
      %461 = vmatmul.mubr.f32.gmra.mrb[0].mxu0 %v317
      %v462 = vpop.f32.mrb[0].mxu0
      %v463 = vadd.f32 %v289, %v462
      %v464 = vpop.f32.mrb[0].mxu0
      %465 = vmatprep.mubr.f32.mxu0 0.0
      %466 = vmatmul.mubr.f32.gmra.mrb[0].mxu0 %v320
      %v467 = vpop.f32.mrb[0].mxu0
      %v468 = vadd.f32 %v289, %v467
      %v469 = vpop.f32.mrb[0].mxu0
      %470 = vmatprep.mubr.f32.mxu0 0.0
      %471 = vmatmul.mubr.f32.gmra.mrb[0].mxu0 %v323
      %v472 = vpop.f32.mrb[0].mxu0
      %v473 = vadd.f32 %v289, %v472
      %v474 = vpop.f32.mrb[0].mxu0
      %475 = vmatprep.mubr.f32.mxu0 0.0
      %476 = vmatmul.mubr.f32.gmra.mrb[0].mxu0 %v326
      %v477 = vpop.f32.mrb[0].mxu0
      %v478 = vadd.f32 %v289, %v477
      %v479 = vpop.f32.mrb[0].mxu0
      %480 = vmatprep.mubr.f32.mxu0 0.0
      %481 = vmatmul.mubr.f32.gmra.mrb[0].mxu0 %v329
      %v482 = vpop.f32.mrb[0].mxu0
      %v483 = vadd.f32 %v289, %v482
      %v484 = vpop.f32.mrb[0].mxu0
      %485 = vmatprep.mubr.f32.mxu0 0.0
      %486 = vmatmul.mubr.f32.gmra.mrb[0].mxu0 %v332
      %v487 = vpop.f32.mrb[0].mxu0
      %v488 = vadd.f32 %v289, %v487
      %v489 = vpop.f32.mrb[0].mxu0
      %490 = vmatprep.mubr.f32.mxu0 0.0
      %491 = vmatmul.mubr.f32.gmra.mrb[0].mxu0 %v335
      %v492 = vpop.f32.mrb[0].mxu0
      %v493 = vadd.f32 %v289, %v492
      %v494 = vpop.f32.mrb[0].mxu0
      %495 = vmatprep.mubr.f32.mxu0 0.0
      %496 = vmatmul.mubr.f32.gmra.mrb[0].mxu0 %v338
      %v497 = vpop.f32.mrb[0].mxu0
      %v498 = vadd.f32 %v289, %v497
      %v499 = vpop.f32.mrb[0].mxu0
      %500 = vmatprep.mubr.f32.mxu0 0.0
      %501 = vmatmul.mubr.f32.gmra.mrb[0].mxu0 %v341
      %v502 = vpop.f32.mrb[0].mxu0
      %v503 = vadd.f32 %v289, %v502
      %v504 = vpop.f32.mrb[0].mxu0
      %505 = vmatprep.mubr.f32.mxu0 0.0
      %506 = vmatmul.mubr.f32.gmra.mrb[0].mxu0 %v344
      %v507 = vpop.f32.mrb[0].mxu0
      %v508 = vadd.f32 %v289, %v507
      %v509 = vpop.f32.mrb[0].mxu0
      %510 = vmatprep.mubr.f32.mxu0 0.0
      %511 = vmatmul.mubr.f32.gmra.mrb[0].mxu0 %v347
      %v512 = vpop.f32.mrb[0].mxu0
      %v513 = vadd.f32 %v289, %v512
      %v514 = vpop.f32.mrb[0].mxu0
      %515 = vmatprep.mubr.f32.mxu0 0.0
      %516 = vmatmul.mubr.f32.gmra.mrb[0].mxu0 %v350
      %v517 = vpop.f32.mrb[0].mxu0
      %v518 = vadd.f32 %v289, %v517
      %v519 = vpop.f32.mrb[0].mxu0
      %520 = vdwg.mxu0
      %v521 = vmax.f32 %v423, 0.0
      %v522 = vmax.f32 %v428, 0.0
      %v523 = vmax.f32 %v433, 0.0
      %v524 = vmax.f32 %v438, 0.0
      %v525 = vmax.f32 %v443, 0.0
      %v526 = vmax.f32 %v448, 0.0
      %v527 = vmax.f32 %v453, 0.0
      %v528 = vmax.f32 %v458, 0.0
      %v529 = vmax.f32 %v463, 0.0
      %v530 = vmax.f32 %v468, 0.0
      %v531 = vmax.f32 %v473, 0.0
      %v532 = vmax.f32 %v478, 0.0
      %v533 = vmax.f32 %v483, 0.0
      %v534 = vmax.f32 %v488, 0.0
      %v535 = vmax.f32 %v493, 0.0
      %v536 = vmax.f32 %v498, 0.0
      %v537 = vmax.f32 %v503, 0.0
      %v538 = vmax.f32 %v508, 0.0
      %v539 = vmax.f32 %v513, 0.0
      %v540 = vmax.f32 %v518, 0.0
      %v541 = vstv %s251
      %v542 = vadd.s32 %v541, 1
      %v543 = vadd.s32 %v541, 2
      %v544 = vadd.s32 %v541, 3
      %v545 = vadd.s32 %v541, 4
      %v546 = vadd.s32 %v541, 5
      %v547 = vadd.s32 %v541, 6
      %v548 = vadd.s32 %v541, 7
      %v549 = vadd.s32 %v541, 8
      %v550 = vadd.s32 %v541, 9
      %vm551 = vcmp.ge.s32.totalorder %v541, 0
      %vm552 = vcmp.ge.s32.totalorder %v542, 0
      %vm553 = vcmp.ge.s32.totalorder %v543, 0
      %vm554 = vcmp.ge.s32.totalorder %v544, 0
      %vm555 = vcmp.ge.s32.totalorder %v545, 0
      %vm556 = vcmp.ge.s32.totalorder %v546, 0
      %vm557 = vcmp.ge.s32.totalorder %v547, 0
      %vm558 = vcmp.ge.s32.totalorder %v548, 0
      %vm559 = vcmp.ge.s32.totalorder %v549, 0
      %vm560 = vcmp.ge.s32.totalorder %v550, 0
      %vm561 = vcmp.lt.s32.totalorder %v541, 16
      %vm562 = vcmp.lt.s32.totalorder %v542, 16
      %vm563 = vcmp.lt.s32.totalorder %v543, 16
      %vm564 = vcmp.lt.s32.totalorder %v544, 16
      %vm565 = vcmp.lt.s32.totalorder %v545, 16
      %vm566 = vcmp.lt.s32.totalorder %v546, 16
      %vm567 = vcmp.lt.s32.totalorder %v547, 16
      %vm568 = vcmp.lt.s32.totalorder %v548, 16
      %vm569 = vcmp.lt.s32.totalorder %v549, 16
      %vm570 = vcmp.lt.s32.totalorder %v550, 16
      %vm571 = vmand %vm551, %vm561
      %vm572 = vmand %vm552, %vm562
      %vm573 = vmand %vm553, %vm563
      %vm574 = vmand %vm554, %vm564
      %vm575 = vmand %vm555, %vm565
      %vm576 = vmand %vm556, %vm566
      %vm577 = vmand %vm557, %vm567
      %vm578 = vmand %vm558, %vm568
      %vm579 = vmand %vm559, %vm569
      %vm580 = vmand %vm560, %vm570
      %v581 = vsel %vm571, 1, 0
      %v582 = vsel %vm572, 1, 0
      %v583 = vsel %vm573, 1, 0
      %v584 = vsel %vm574, 1, 0
      %v585 = vsel %vm575, 1, 0
      %v586 = vsel %vm576, 1, 0
      %v587 = vsel %vm577, 1, 0
      %v588 = vsel %vm578, 1, 0
      %v589 = vsel %vm579, 1, 0
      %v590 = vsel %vm580, 1, 0
      %vm591 = vcmp.eq.s32.totalorder %v581, 1
      %vm592 = vcmp.eq.s32.totalorder %v582, 1
      %vm593 = vcmp.eq.s32.totalorder %v583, 1
      %vm594 = vcmp.eq.s32.totalorder %v584, 1
      %vm595 = vcmp.eq.s32.totalorder %v585, 1
      %vm596 = vcmp.eq.s32.totalorder %v586, 1
      %vm597 = vcmp.eq.s32.totalorder %v587, 1
      %vm598 = vcmp.eq.s32.totalorder %v588, 1
      %vm599 = vcmp.eq.s32.totalorder %v589, 1
      %vm600 = vcmp.eq.s32.totalorder %v590, 1
      %v601 = vsel %vm591, %v521, 0.0
      %v602 = vsel %vm591, %v522, 0.0
      %v603 = vsel %vm592, %v523, 0.0
      %v604 = vsel %vm592, %v524, 0.0
      %v605 = vsel %vm593, %v525, 0.0
      %v606 = vsel %vm593, %v526, 0.0
      %v607 = vsel %vm594, %v527, 0.0
      %v608 = vsel %vm594, %v528, 0.0
      %v609 = vsel %vm595, %v529, 0.0
      %v610 = vsel %vm595, %v530, 0.0
      %v611 = vsel %vm596, %v531, 0.0
      %v612 = vsel %vm596, %v532, 0.0
      %v613 = vsel %vm597, %v533, 0.0
      %v614 = vsel %vm597, %v534, 0.0
      %v615 = vsel %vm598, %v535, 0.0
      %v616 = vsel %vm598, %v536, 0.0
      %v617 = vsel %vm599, %v537, 0.0
      %v618 = vsel %vm599, %v538, 0.0
      %v619 = vsel %vm600, %v539, 0.0
      %v620 = vsel %vm600, %v540, 0.0
      %vm641 = vcmask 1040384
      %v642 = vrot.slane %v601, 7
      %v643 = vrot.slane %v602, 7
      %v644 = vsel %vm641, %v642, %v643
      %v645 = vrot.slane %v603, 7
      %v646 = vrot.slane %v604, 7
      %v647 = vsel %vm641, %v645, %v646
      %v648 = vrot.slane %v605, 7
      %v649 = vrot.slane %v606, 7
      %v650 = vsel %vm641, %v648, %v649
      %v651 = vrot.slane %v607, 7
      %v652 = vrot.slane %v608, 7
      %v653 = vsel %vm641, %v651, %v652
      %v654 = vrot.slane %v609, 7
      %v655 = vrot.slane %v610, 7
      %v656 = vsel %vm641, %v654, %v655
      %v657 = vrot.slane %v611, 7
      %v658 = vrot.slane %v612, 7
      %v659 = vsel %vm641, %v657, %v658
      %v660 = vrot.slane %v613, 7
      %v661 = vrot.slane %v614, 7
      %v662 = vsel %vm641, %v660, %v661
      %v663 = vrot.slane %v615, 7
      %v664 = vrot.slane %v616, 7
      %v665 = vsel %vm641, %v663, %v664
      %v666 = vrot.slane %v617, 7
      %v667 = vrot.slane %v618, 7
      %v668 = vsel %vm641, %v666, %v667
      %v669 = vrot.slane %v619, 7
      %v670 = vrot.slane %v620, 7
      %v671 = vsel %vm641, %v669, %v670
      %v702 = vsel %vm641, 0.0, %v642
      %v703 = vsel %vm641, 0.0, %v645
      %v704 = vsel %vm641, 0.0, %v648
      %v705 = vsel %vm641, 0.0, %v651
      %v706 = vsel %vm641, 0.0, %v654
      %v707 = vsel %vm641, 0.0, %v657
      %v708 = vsel %vm641, 0.0, %v660
      %v709 = vsel %vm641, 0.0, %v663
      %v710 = vsel %vm641, 0.0, %v666
      %v711 = vsel %vm641, 0.0, %v669
      %v712 = vsel %vm641, %v643, 0.0
      %v713 = vsel %vm641, %v646, 0.0
      %v714 = vsel %vm641, %v649, 0.0
      %v715 = vsel %vm641, %v652, 0.0
      %v716 = vsel %vm641, %v655, 0.0
      %v717 = vsel %vm641, %v658, 0.0
      %v718 = vsel %vm641, %v661, 0.0
      %v719 = vsel %vm641, %v664, 0.0
      %v720 = vsel %vm641, %v667, 0.0
      %v721 = vsel %vm641, %v670, 0.0
      %v722 = vld [vmem:[%s3] sm:$0x7]
      %v723 = vld [vmem:[%s3 + $0x4] sm:$0x7]
      %v724 = vld [vmem:[%s3 + $0x8] sm:$0x7]
      %v725 = vlaneseq
      %v726 = vshrl.u32 %v725, 7
      %v727 = vsub.s32 0, %v726
      %v728 = vrot.slane %v722, %v727
      %v729 = vmul.f32 %v702, %v728
      %v730 = vmul.f32 %v644, %v728
      %v731 = vmul.f32 %v703, %v728
      %v732 = vmul.f32 %v647, %v728
      %v733 = vmul.f32 %v704, %v728
      %v734 = vmul.f32 %v650, %v728
      %v735 = vmul.f32 %v705, %v728
      %v736 = vmul.f32 %v653, %v728
      %v737 = vmul.f32 %v706, %v728
      %v738 = vmul.f32 %v656, %v728
      %v739 = vmul.f32 %v707, %v728
      %v740 = vmul.f32 %v659, %v728
      %v741 = vmul.f32 %v708, %v728
      %v742 = vmul.f32 %v662, %v728
      %v743 = vmul.f32 %v709, %v728
      %v744 = vmul.f32 %v665, %v728
      %v745 = vadd.f32 %v729, 0.0
      %v746 = vadd.f32 %v730, 0.0
      %v747 = vadd.f32 %v731, 0.0
      %v748 = vadd.f32 %v732, 0.0
      %v749 = vadd.f32 %v733, 0.0
      %v750 = vadd.f32 %v734, 0.0
      %v751 = vadd.f32 %v735, 0.0
      %v752 = vadd.f32 %v736, 0.0
      %v753 = vadd.f32 %v737, 0.0
      %v754 = vadd.f32 %v738, 0.0
      %v755 = vadd.f32 %v739, 0.0
      %v756 = vadd.f32 %v740, 0.0
      %v757 = vadd.f32 %v741, 0.0
      %v758 = vadd.f32 %v742, 0.0
      %v759 = vadd.f32 %v743, 0.0
      %v760 = vadd.f32 %v744, 0.0
      %v761 = vlaneseq
      %v762 = vshrl.u32 %v761, 7
      %v763 = vsub.s32 1, %v762
      %v764 = vrot.slane %v722, %v763
      %v765 = vmul.f32 %v702, %v764
      %v766 = vmul.f32 %v644, %v764
      %v767 = vmul.f32 %v712, %v764
      %v768 = vmul.f32 %v703, %v764
      %v769 = vmul.f32 %v647, %v764
      %v770 = vmul.f32 %v713, %v764
      %v771 = vmul.f32 %v704, %v764
      %v772 = vmul.f32 %v650, %v764
      %v773 = vmul.f32 %v714, %v764
      %v774 = vmul.f32 %v705, %v764
      %v775 = vmul.f32 %v653, %v764
      %v776 = vmul.f32 %v715, %v764
      %v777 = vmul.f32 %v706, %v764
      %v778 = vmul.f32 %v656, %v764
      %v779 = vmul.f32 %v716, %v764
      %v780 = vmul.f32 %v707, %v764
      %v781 = vmul.f32 %v659, %v764
      %v782 = vmul.f32 %v717, %v764
      %v783 = vmul.f32 %v708, %v764
      %v784 = vmul.f32 %v662, %v764
      %v785 = vmul.f32 %v718, %v764
      %v786 = vmul.f32 %v709, %v764
      %v787 = vmul.f32 %v665, %v764
      %v788 = vmul.f32 %v719, %v764
      %vm813 = vcmask 1046528
      %v814 = vrot.slane %v765, 1
      %v815 = vrot.slane %v766, 1
      %v816 = vsel %vm813, %v814, %v815
      %v817 = vrot.slane %v767, 1
      %v818 = vsel %vm813, %v815, %v817
      %v819 = vrot.slane %v768, 1
      %v820 = vrot.slane %v769, 1
      %v821 = vsel %vm813, %v819, %v820
      %v822 = vrot.slane %v770, 1
      %v823 = vsel %vm813, %v820, %v822
      %v824 = vrot.slane %v771, 1
      %v825 = vrot.slane %v772, 1
      %v826 = vsel %vm813, %v824, %v825
      %v827 = vrot.slane %v773, 1
      %v828 = vsel %vm813, %v825, %v827
      %v829 = vrot.slane %v774, 1
      %v830 = vrot.slane %v775, 1
      %v831 = vsel %vm813, %v829, %v830
      %v832 = vrot.slane %v776, 1
      %v833 = vsel %vm813, %v830, %v832
      %v834 = vrot.slane %v777, 1
      %v835 = vrot.slane %v778, 1
      %v836 = vsel %vm813, %v834, %v835
      %v837 = vrot.slane %v779, 1
      %v838 = vsel %vm813, %v835, %v837
      %v839 = vrot.slane %v780, 1
      %v840 = vrot.slane %v781, 1
      %v841 = vsel %vm813, %v839, %v840
      %v842 = vrot.slane %v782, 1
      %v843 = vsel %vm813, %v840, %v842
      %v844 = vrot.slane %v783, 1
      %v845 = vrot.slane %v784, 1
      %v846 = vsel %vm813, %v844, %v845
      %v847 = vrot.slane %v785, 1
      %v848 = vsel %vm813, %v845, %v847
      %v849 = vrot.slane %v786, 1
      %v850 = vrot.slane %v787, 1
      %v851 = vsel %vm813, %v849, %v850
      %v852 = vrot.slane %v788, 1
      %v853 = vsel %vm813, %v850, %v852
      %v870 = vadd.f32 %v745, %v816
      %v871 = vadd.f32 %v746, %v818
      %v872 = vadd.f32 %v747, %v821
      %v873 = vadd.f32 %v748, %v823
      %v874 = vadd.f32 %v749, %v826
      %v875 = vadd.f32 %v750, %v828
      %v876 = vadd.f32 %v751, %v831
      %v877 = vadd.f32 %v752, %v833
      %v878 = vadd.f32 %v753, %v836
      %v879 = vadd.f32 %v754, %v838
      %v880 = vadd.f32 %v755, %v841
      %v881 = vadd.f32 %v756, %v843
      %v882 = vadd.f32 %v757, %v846
      %v883 = vadd.f32 %v758, %v848
      %v884 = vadd.f32 %v759, %v851
      %v885 = vadd.f32 %v760, %v853
      %v886 = vlaneseq
      %v887 = vshrl.u32 %v886, 7
      %v888 = vsub.s32 2, %v887
      %v889 = vrot.slane %v722, %v888
      %v890 = vmul.f32 %v702, %v889
      %v891 = vmul.f32 %v644, %v889
      %v892 = vmul.f32 %v712, %v889
      %v893 = vmul.f32 %v703, %v889
      %v894 = vmul.f32 %v647, %v889
      %v895 = vmul.f32 %v713, %v889
      %v896 = vmul.f32 %v704, %v889
      %v897 = vmul.f32 %v650, %v889
      %v898 = vmul.f32 %v714, %v889
      %v899 = vmul.f32 %v705, %v889
      %v900 = vmul.f32 %v653, %v889
      %v901 = vmul.f32 %v715, %v889
      %v902 = vmul.f32 %v706, %v889
      %v903 = vmul.f32 %v656, %v889
      %v904 = vmul.f32 %v716, %v889
      %v905 = vmul.f32 %v707, %v889
      %v906 = vmul.f32 %v659, %v889
      %v907 = vmul.f32 %v717, %v889
      %v908 = vmul.f32 %v708, %v889
      %v909 = vmul.f32 %v662, %v889
      %v910 = vmul.f32 %v718, %v889
      %v911 = vmul.f32 %v709, %v889
      %v912 = vmul.f32 %v665, %v889
      %v913 = vmul.f32 %v719, %v889
      %vm938 = vcmask 1045504
      %v939 = vrot.slane %v890, 2
      %v940 = vrot.slane %v891, 2
      %v941 = vsel %vm938, %v939, %v940
      %v942 = vrot.slane %v892, 2
      %v943 = vsel %vm938, %v940, %v942
      %v944 = vrot.slane %v893, 2
      %v945 = vrot.slane %v894, 2
      %v946 = vsel %vm938, %v944, %v945
      %v947 = vrot.slane %v895, 2
      %v948 = vsel %vm938, %v945, %v947
      %v949 = vrot.slane %v896, 2
      %v950 = vrot.slane %v897, 2
      %v951 = vsel %vm938, %v949, %v950
      %v952 = vrot.slane %v898, 2
      %v953 = vsel %vm938, %v950, %v952
      %v954 = vrot.slane %v899, 2
      %v955 = vrot.slane %v900, 2
      %v956 = vsel %vm938, %v954, %v955
      %v957 = vrot.slane %v901, 2
      %v958 = vsel %vm938, %v955, %v957
      %v959 = vrot.slane %v902, 2
      %v960 = vrot.slane %v903, 2
      %v961 = vsel %vm938, %v959, %v960
      %v962 = vrot.slane %v904, 2
      %v963 = vsel %vm938, %v960, %v962
      %v964 = vrot.slane %v905, 2
      %v965 = vrot.slane %v906, 2
      %v966 = vsel %vm938, %v964, %v965
      %v967 = vrot.slane %v907, 2
      %v968 = vsel %vm938, %v965, %v967
      %v969 = vrot.slane %v908, 2
      %v970 = vrot.slane %v909, 2
      %v971 = vsel %vm938, %v969, %v970
      %v972 = vrot.slane %v910, 2
      %v973 = vsel %vm938, %v970, %v972
      %v974 = vrot.slane %v911, 2
      %v975 = vrot.slane %v912, 2
      %v976 = vsel %vm938, %v974, %v975
      %v977 = vrot.slane %v913, 2
      %v978 = vsel %vm938, %v975, %v977
      %v995 = vadd.f32 %v870, %v941
      %v996 = vadd.f32 %v871, %v943
      %v997 = vadd.f32 %v872, %v946
      %v998 = vadd.f32 %v873, %v948
      %v999 = vadd.f32 %v874, %v951
      %v1000 = vadd.f32 %v875, %v953
      %v1001 = vadd.f32 %v876, %v956
      %v1002 = vadd.f32 %v877, %v958
      %v1003 = vadd.f32 %v878, %v961
      %v1004 = vadd.f32 %v879, %v963
      %v1005 = vadd.f32 %v880, %v966
      %v1006 = vadd.f32 %v881, %v968
      %v1007 = vadd.f32 %v882, %v971
      %v1008 = vadd.f32 %v883, %v973
      %v1009 = vadd.f32 %v884, %v976
      %v1010 = vadd.f32 %v885, %v978
      %v1011 = vlaneseq
      %v1012 = vshrl.u32 %v1011, 7
      %v1013 = vsub.s32 0, %v1012
      %v1014 = vrot.slane %v723, %v1013
      %v1015 = vmul.f32 %v703, %v1014
      %v1016 = vmul.f32 %v647, %v1014
      %v1017 = vmul.f32 %v704, %v1014
      %v1018 = vmul.f32 %v650, %v1014
      %v1019 = vmul.f32 %v705, %v1014
      %v1020 = vmul.f32 %v653, %v1014
      %v1021 = vmul.f32 %v706, %v1014
      %v1022 = vmul.f32 %v656, %v1014
      %v1023 = vmul.f32 %v707, %v1014
      %v1024 = vmul.f32 %v659, %v1014
      %v1025 = vmul.f32 %v708, %v1014
      %v1026 = vmul.f32 %v662, %v1014
      %v1027 = vmul.f32 %v709, %v1014
      %v1028 = vmul.f32 %v665, %v1014
      %v1029 = vmul.f32 %v710, %v1014
      %v1030 = vmul.f32 %v668, %v1014
      %v1031 = vadd.f32 %v995, %v1015
      %v1032 = vadd.f32 %v996, %v1016
      %v1033 = vadd.f32 %v997, %v1017
      %v1034 = vadd.f32 %v998, %v1018
      %v1035 = vadd.f32 %v999, %v1019
      %v1036 = vadd.f32 %v1000, %v1020
      %v1037 = vadd.f32 %v1001, %v1021
      %v1038 = vadd.f32 %v1002, %v1022
      %v1039 = vadd.f32 %v1003, %v1023
      %v1040 = vadd.f32 %v1004, %v1024
      %v1041 = vadd.f32 %v1005, %v1025
      %v1042 = vadd.f32 %v1006, %v1026
      %v1043 = vadd.f32 %v1007, %v1027
      %v1044 = vadd.f32 %v1008, %v1028
      %v1045 = vadd.f32 %v1009, %v1029
      %v1046 = vadd.f32 %v1010, %v1030
      %v1047 = vlaneseq
      %v1048 = vshrl.u32 %v1047, 7
      %v1049 = vsub.s32 1, %v1048
      %v1050 = vrot.slane %v723, %v1049
      %v1051 = vmul.f32 %v703, %v1050
      %v1052 = vmul.f32 %v647, %v1050
      %v1053 = vmul.f32 %v713, %v1050
      %v1054 = vmul.f32 %v704, %v1050
      %v1055 = vmul.f32 %v650, %v1050
      %v1056 = vmul.f32 %v714, %v1050
      %v1057 = vmul.f32 %v705, %v1050
      %v1058 = vmul.f32 %v653, %v1050
      %v1059 = vmul.f32 %v715, %v1050
      %v1060 = vmul.f32 %v706, %v1050
      %v1061 = vmul.f32 %v656, %v1050
      %v1062 = vmul.f32 %v716, %v1050
      %v1063 = vmul.f32 %v707, %v1050
      %v1064 = vmul.f32 %v659, %v1050
      %v1065 = vmul.f32 %v717, %v1050
      %v1066 = vmul.f32 %v708, %v1050
      %v1067 = vmul.f32 %v662, %v1050
      %v1068 = vmul.f32 %v718, %v1050
      %v1069 = vmul.f32 %v709, %v1050
      %v1070 = vmul.f32 %v665, %v1050
      %v1071 = vmul.f32 %v719, %v1050
      %v1072 = vmul.f32 %v710, %v1050
      %v1073 = vmul.f32 %v668, %v1050
      %v1074 = vmul.f32 %v720, %v1050
      %v1099 = vrot.slane %v1051, 1
      %v1100 = vrot.slane %v1052, 1
      %v1101 = vsel %vm813, %v1099, %v1100
      %v1102 = vrot.slane %v1053, 1
      %v1103 = vsel %vm813, %v1100, %v1102
      %v1104 = vrot.slane %v1054, 1
      %v1105 = vrot.slane %v1055, 1
      %v1106 = vsel %vm813, %v1104, %v1105
      %v1107 = vrot.slane %v1056, 1
      %v1108 = vsel %vm813, %v1105, %v1107
      %v1109 = vrot.slane %v1057, 1
      %v1110 = vrot.slane %v1058, 1
      %v1111 = vsel %vm813, %v1109, %v1110
      %v1112 = vrot.slane %v1059, 1
      %v1113 = vsel %vm813, %v1110, %v1112
      %v1114 = vrot.slane %v1060, 1
      %v1115 = vrot.slane %v1061, 1
      %v1116 = vsel %vm813, %v1114, %v1115
      %v1117 = vrot.slane %v1062, 1
      %v1118 = vsel %vm813, %v1115, %v1117
      %v1119 = vrot.slane %v1063, 1
      %v1120 = vrot.slane %v1064, 1
      %v1121 = vsel %vm813, %v1119, %v1120
      %v1122 = vrot.slane %v1065, 1
      %v1123 = vsel %vm813, %v1120, %v1122
      %v1124 = vrot.slane %v1066, 1
      %v1125 = vrot.slane %v1067, 1
      %v1126 = vsel %vm813, %v1124, %v1125
      %v1127 = vrot.slane %v1068, 1
      %v1128 = vsel %vm813, %v1125, %v1127
      %v1129 = vrot.slane %v1069, 1
      %v1130 = vrot.slane %v1070, 1
      %v1131 = vsel %vm813, %v1129, %v1130
      %v1132 = vrot.slane %v1071, 1
      %v1133 = vsel %vm813, %v1130, %v1132
      %v1134 = vrot.slane %v1072, 1
      %v1135 = vrot.slane %v1073, 1
      %v1136 = vsel %vm813, %v1134, %v1135
      %v1137 = vrot.slane %v1074, 1
      %v1138 = vsel %vm813, %v1135, %v1137
      %v1155 = vadd.f32 %v1031, %v1101
      %v1156 = vadd.f32 %v1032, %v1103
      %v1157 = vadd.f32 %v1033, %v1106
      %v1158 = vadd.f32 %v1034, %v1108
      %v1159 = vadd.f32 %v1035, %v1111
      %v1160 = vadd.f32 %v1036, %v1113
      %v1161 = vadd.f32 %v1037, %v1116
      %v1162 = vadd.f32 %v1038, %v1118
      %v1163 = vadd.f32 %v1039, %v1121
      %v1164 = vadd.f32 %v1040, %v1123
      %v1165 = vadd.f32 %v1041, %v1126
      %v1166 = vadd.f32 %v1042, %v1128
      %v1167 = vadd.f32 %v1043, %v1131
      %v1168 = vadd.f32 %v1044, %v1133
      %v1169 = vadd.f32 %v1045, %v1136
      %v1170 = vadd.f32 %v1046, %v1138
      %v1171 = vlaneseq
      %v1172 = vshrl.u32 %v1171, 7
      %v1173 = vsub.s32 2, %v1172
      %v1174 = vrot.slane %v723, %v1173
      %v1175 = vmul.f32 %v703, %v1174
      %v1176 = vmul.f32 %v647, %v1174
      %v1177 = vmul.f32 %v713, %v1174
      %v1178 = vmul.f32 %v704, %v1174
      %v1179 = vmul.f32 %v650, %v1174
      %v1180 = vmul.f32 %v714, %v1174
      %v1181 = vmul.f32 %v705, %v1174
      %v1182 = vmul.f32 %v653, %v1174
      %v1183 = vmul.f32 %v715, %v1174
      %v1184 = vmul.f32 %v706, %v1174
      %v1185 = vmul.f32 %v656, %v1174
      %v1186 = vmul.f32 %v716, %v1174
      %v1187 = vmul.f32 %v707, %v1174
      %v1188 = vmul.f32 %v659, %v1174
      %v1189 = vmul.f32 %v717, %v1174
      %v1190 = vmul.f32 %v708, %v1174
      %v1191 = vmul.f32 %v662, %v1174
      %v1192 = vmul.f32 %v718, %v1174
      %v1193 = vmul.f32 %v709, %v1174
      %v1194 = vmul.f32 %v665, %v1174
      %v1195 = vmul.f32 %v719, %v1174
      %v1196 = vmul.f32 %v710, %v1174
      %v1197 = vmul.f32 %v668, %v1174
      %v1198 = vmul.f32 %v720, %v1174
      %v1223 = vrot.slane %v1175, 2
      %v1224 = vrot.slane %v1176, 2
      %v1225 = vsel %vm938, %v1223, %v1224
      %v1226 = vrot.slane %v1177, 2
      %v1227 = vsel %vm938, %v1224, %v1226
      %v1228 = vrot.slane %v1178, 2
      %v1229 = vrot.slane %v1179, 2
      %v1230 = vsel %vm938, %v1228, %v1229
      %v1231 = vrot.slane %v1180, 2
      %v1232 = vsel %vm938, %v1229, %v1231
      %v1233 = vrot.slane %v1181, 2
      %v1234 = vrot.slane %v1182, 2
      %v1235 = vsel %vm938, %v1233, %v1234
      %v1236 = vrot.slane %v1183, 2
      %v1237 = vsel %vm938, %v1234, %v1236
      %v1238 = vrot.slane %v1184, 2
      %v1239 = vrot.slane %v1185, 2
      %v1240 = vsel %vm938, %v1238, %v1239
      %v1241 = vrot.slane %v1186, 2
      %v1242 = vsel %vm938, %v1239, %v1241
      %v1243 = vrot.slane %v1187, 2
      %v1244 = vrot.slane %v1188, 2
      %v1245 = vsel %vm938, %v1243, %v1244
      %v1246 = vrot.slane %v1189, 2
      %v1247 = vsel %vm938, %v1244, %v1246
      %v1248 = vrot.slane %v1190, 2
      %v1249 = vrot.slane %v1191, 2
      %v1250 = vsel %vm938, %v1248, %v1249
      %v1251 = vrot.slane %v1192, 2
      %v1252 = vsel %vm938, %v1249, %v1251
      %v1253 = vrot.slane %v1193, 2
      %v1254 = vrot.slane %v1194, 2
      %v1255 = vsel %vm938, %v1253, %v1254
      %v1256 = vrot.slane %v1195, 2
      %v1257 = vsel %vm938, %v1254, %v1256
      %v1258 = vrot.slane %v1196, 2
      %v1259 = vrot.slane %v1197, 2
      %v1260 = vsel %vm938, %v1258, %v1259
      %v1261 = vrot.slane %v1198, 2
      %v1262 = vsel %vm938, %v1259, %v1261
      %v1279 = vadd.f32 %v1155, %v1225
      %v1280 = vadd.f32 %v1156, %v1227
      %v1281 = vadd.f32 %v1157, %v1230
      %v1282 = vadd.f32 %v1158, %v1232
      %v1283 = vadd.f32 %v1159, %v1235
      %v1284 = vadd.f32 %v1160, %v1237
      %v1285 = vadd.f32 %v1161, %v1240
      %v1286 = vadd.f32 %v1162, %v1242
      %v1287 = vadd.f32 %v1163, %v1245
      %v1288 = vadd.f32 %v1164, %v1247
      %v1289 = vadd.f32 %v1165, %v1250
      %v1290 = vadd.f32 %v1166, %v1252
      %v1291 = vadd.f32 %v1167, %v1255
      %v1292 = vadd.f32 %v1168, %v1257
      %v1293 = vadd.f32 %v1169, %v1260
      %v1294 = vadd.f32 %v1170, %v1262
      %v1295 = vlaneseq
      %v1296 = vshrl.u32 %v1295, 7
      %v1297 = vsub.s32 0, %v1296
      %v1298 = vrot.slane %v724, %v1297
      %v1299 = vmul.f32 %v704, %v1298
      %v1300 = vmul.f32 %v650, %v1298
      %v1301 = vmul.f32 %v705, %v1298
      %v1302 = vmul.f32 %v653, %v1298
      %v1303 = vmul.f32 %v706, %v1298
      %v1304 = vmul.f32 %v656, %v1298
      %v1305 = vmul.f32 %v707, %v1298
      %v1306 = vmul.f32 %v659, %v1298
      %v1307 = vmul.f32 %v708, %v1298
      %v1308 = vmul.f32 %v662, %v1298
      %v1309 = vmul.f32 %v709, %v1298
      %v1310 = vmul.f32 %v665, %v1298
      %v1311 = vmul.f32 %v710, %v1298
      %v1312 = vmul.f32 %v668, %v1298
      %v1313 = vmul.f32 %v711, %v1298
      %v1314 = vmul.f32 %v671, %v1298
      %v1315 = vadd.f32 %v1279, %v1299
      %v1316 = vadd.f32 %v1280, %v1300
      %v1317 = vadd.f32 %v1281, %v1301
      %v1318 = vadd.f32 %v1282, %v1302
      %v1319 = vadd.f32 %v1283, %v1303
      %v1320 = vadd.f32 %v1284, %v1304
      %v1321 = vadd.f32 %v1285, %v1305
      %v1322 = vadd.f32 %v1286, %v1306
      %v1323 = vadd.f32 %v1287, %v1307
      %v1324 = vadd.f32 %v1288, %v1308
      %v1325 = vadd.f32 %v1289, %v1309
      %v1326 = vadd.f32 %v1290, %v1310
      %v1327 = vadd.f32 %v1291, %v1311
      %v1328 = vadd.f32 %v1292, %v1312
      %v1329 = vadd.f32 %v1293, %v1313
      %v1330 = vadd.f32 %v1294, %v1314
      %v1331 = vlaneseq
      %v1332 = vshrl.u32 %v1331, 7
      %v1333 = vsub.s32 1, %v1332
      %v1334 = vrot.slane %v724, %v1333
      %v1335 = vmul.f32 %v704, %v1334
      %v1336 = vmul.f32 %v650, %v1334
      %v1337 = vmul.f32 %v714, %v1334
      %v1338 = vmul.f32 %v705, %v1334
      %v1339 = vmul.f32 %v653, %v1334
      %v1340 = vmul.f32 %v715, %v1334
      %v1341 = vmul.f32 %v706, %v1334
      %v1342 = vmul.f32 %v656, %v1334
      %v1343 = vmul.f32 %v716, %v1334
      %v1344 = vmul.f32 %v707, %v1334
      %v1345 = vmul.f32 %v659, %v1334
      %v1346 = vmul.f32 %v717, %v1334
      %v1347 = vmul.f32 %v708, %v1334
      %v1348 = vmul.f32 %v662, %v1334
      %v1349 = vmul.f32 %v718, %v1334
      %v1350 = vmul.f32 %v709, %v1334
      %v1351 = vmul.f32 %v665, %v1334
      %v1352 = vmul.f32 %v719, %v1334
      %v1353 = vmul.f32 %v710, %v1334
      %v1354 = vmul.f32 %v668, %v1334
      %v1355 = vmul.f32 %v720, %v1334
      %v1356 = vmul.f32 %v711, %v1334
      %v1357 = vmul.f32 %v671, %v1334
      %v1358 = vmul.f32 %v721, %v1334
      %v1383 = vrot.slane %v1335, 1
      %v1384 = vrot.slane %v1336, 1
      %v1385 = vsel %vm813, %v1383, %v1384
      %v1386 = vrot.slane %v1337, 1
      %v1387 = vsel %vm813, %v1384, %v1386
      %v1388 = vrot.slane %v1338, 1
      %v1389 = vrot.slane %v1339, 1
      %v1390 = vsel %vm813, %v1388, %v1389
      %v1391 = vrot.slane %v1340, 1
      %v1392 = vsel %vm813, %v1389, %v1391
      %v1393 = vrot.slane %v1341, 1
      %v1394 = vrot.slane %v1342, 1
      %v1395 = vsel %vm813, %v1393, %v1394
      %v1396 = vrot.slane %v1343, 1
      %v1397 = vsel %vm813, %v1394, %v1396
      %v1398 = vrot.slane %v1344, 1
      %v1399 = vrot.slane %v1345, 1
      %v1400 = vsel %vm813, %v1398, %v1399
      %v1401 = vrot.slane %v1346, 1
      %v1402 = vsel %vm813, %v1399, %v1401
      %v1403 = vrot.slane %v1347, 1
      %v1404 = vrot.slane %v1348, 1
      %v1405 = vsel %vm813, %v1403, %v1404
      %v1406 = vrot.slane %v1349, 1
      %v1407 = vsel %vm813, %v1404, %v1406
      %v1408 = vrot.slane %v1350, 1
      %v1409 = vrot.slane %v1351, 1
      %v1410 = vsel %vm813, %v1408, %v1409
      %v1411 = vrot.slane %v1352, 1
      %v1412 = vsel %vm813, %v1409, %v1411
      %v1413 = vrot.slane %v1353, 1
      %v1414 = vrot.slane %v1354, 1
      %v1415 = vsel %vm813, %v1413, %v1414
      %v1416 = vrot.slane %v1355, 1
      %v1417 = vsel %vm813, %v1414, %v1416
      %v1418 = vrot.slane %v1356, 1
      %v1419 = vrot.slane %v1357, 1
      %v1420 = vsel %vm813, %v1418, %v1419
      %v1421 = vrot.slane %v1358, 1
      %v1422 = vsel %vm813, %v1419, %v1421
      %v1439 = vadd.f32 %v1315, %v1385
      %v1440 = vadd.f32 %v1316, %v1387
      %v1441 = vadd.f32 %v1317, %v1390
      %v1442 = vadd.f32 %v1318, %v1392
      %v1443 = vadd.f32 %v1319, %v1395
      %v1444 = vadd.f32 %v1320, %v1397
      %v1445 = vadd.f32 %v1321, %v1400
      %v1446 = vadd.f32 %v1322, %v1402
      %v1447 = vadd.f32 %v1323, %v1405
      %v1448 = vadd.f32 %v1324, %v1407
      %v1449 = vadd.f32 %v1325, %v1410
      %v1450 = vadd.f32 %v1326, %v1412
      %v1451 = vadd.f32 %v1327, %v1415
      %v1452 = vadd.f32 %v1328, %v1417
      %v1453 = vadd.f32 %v1329, %v1420
      %v1454 = vadd.f32 %v1330, %v1422
      %v1455 = vlaneseq
      %v1456 = vshrl.u32 %v1455, 7
      %v1457 = vsub.s32 2, %v1456
      %v1458 = vrot.slane %v724, %v1457
      %v1459 = vmul.f32 %v704, %v1458
      %v1460 = vmul.f32 %v650, %v1458
      %v1461 = vmul.f32 %v714, %v1458
      %v1462 = vmul.f32 %v705, %v1458
      %v1463 = vmul.f32 %v653, %v1458
      %v1464 = vmul.f32 %v715, %v1458
      %v1465 = vmul.f32 %v706, %v1458
      %v1466 = vmul.f32 %v656, %v1458
      %v1467 = vmul.f32 %v716, %v1458
      %v1468 = vmul.f32 %v707, %v1458
      %v1469 = vmul.f32 %v659, %v1458
      %v1470 = vmul.f32 %v717, %v1458
      %v1471 = vmul.f32 %v708, %v1458
      %v1472 = vmul.f32 %v662, %v1458
      %v1473 = vmul.f32 %v718, %v1458
      %v1474 = vmul.f32 %v709, %v1458
      %v1475 = vmul.f32 %v665, %v1458
      %v1476 = vmul.f32 %v719, %v1458
      %v1477 = vmul.f32 %v710, %v1458
      %v1478 = vmul.f32 %v668, %v1458
      %v1479 = vmul.f32 %v720, %v1458
      %v1480 = vmul.f32 %v711, %v1458
      %v1481 = vmul.f32 %v671, %v1458
      %v1482 = vmul.f32 %v721, %v1458
      %v1507 = vrot.slane %v1459, 2
      %v1508 = vrot.slane %v1460, 2
      %v1509 = vsel %vm938, %v1507, %v1508
      %v1510 = vrot.slane %v1461, 2
      %v1511 = vsel %vm938, %v1508, %v1510
      %v1512 = vrot.slane %v1462, 2
      %v1513 = vrot.slane %v1463, 2
      %v1514 = vsel %vm938, %v1512, %v1513
      %v1515 = vrot.slane %v1464, 2
      %v1516 = vsel %vm938, %v1513, %v1515
      %v1517 = vrot.slane %v1465, 2
      %v1518 = vrot.slane %v1466, 2
      %v1519 = vsel %vm938, %v1517, %v1518
      %v1520 = vrot.slane %v1467, 2
      %v1521 = vsel %vm938, %v1518, %v1520
      %v1522 = vrot.slane %v1468, 2
      %v1523 = vrot.slane %v1469, 2
      %v1524 = vsel %vm938, %v1522, %v1523
      %v1525 = vrot.slane %v1470, 2
      %v1526 = vsel %vm938, %v1523, %v1525
      %v1527 = vrot.slane %v1471, 2
      %v1528 = vrot.slane %v1472, 2
      %v1529 = vsel %vm938, %v1527, %v1528
      %v1530 = vrot.slane %v1473, 2
      %v1531 = vsel %vm938, %v1528, %v1530
      %v1532 = vrot.slane %v1474, 2
      %v1533 = vrot.slane %v1475, 2
      %v1534 = vsel %vm938, %v1532, %v1533
      %v1535 = vrot.slane %v1476, 2
      %v1536 = vsel %vm938, %v1533, %v1535
      %v1537 = vrot.slane %v1477, 2
      %v1538 = vrot.slane %v1478, 2
      %v1539 = vsel %vm938, %v1537, %v1538
      %v1540 = vrot.slane %v1479, 2
      %v1541 = vsel %vm938, %v1538, %v1540
      %v1542 = vrot.slane %v1480, 2
      %v1543 = vrot.slane %v1481, 2
      %v1544 = vsel %vm938, %v1542, %v1543
      %v1545 = vrot.slane %v1482, 2
      %v1546 = vsel %vm938, %v1543, %v1545
      %v1563 = vadd.f32 %v1439, %v1509
      %v1564 = vadd.f32 %v1440, %v1511
      %v1565 = vadd.f32 %v1441, %v1514
      %v1566 = vadd.f32 %v1442, %v1516
      %v1567 = vadd.f32 %v1443, %v1519
      %v1568 = vadd.f32 %v1444, %v1521
      %v1569 = vadd.f32 %v1445, %v1524
      %v1570 = vadd.f32 %v1446, %v1526
      %v1571 = vadd.f32 %v1447, %v1529
      %v1572 = vadd.f32 %v1448, %v1531
      %v1573 = vadd.f32 %v1449, %v1534
      %v1574 = vadd.f32 %v1450, %v1536
      %v1575 = vadd.f32 %v1451, %v1539
      %v1576 = vadd.f32 %v1452, %v1541
      %v1577 = vadd.f32 %v1453, %v1544
      %v1578 = vadd.f32 %v1454, %v1546
      %v1579 = vld [vmem:[%s4] sm:$0x1]
      %v1581 = vlaneseq
      %v1582 = vshrl.u32 %v1581, 7
      %v1583 = vsub.s32 0, %v1582
      %v1584 = vrot.slane %v1579, %v1583
      %v1586 = vadd.f32 %v1563, %v1584
      %v1587 = vadd.f32 %v1564, %v1584
      %v1588 = vadd.f32 %v1565, %v1584
      %v1589 = vadd.f32 %v1566, %v1584
      %v1590 = vadd.f32 %v1567, %v1584
      %v1591 = vadd.f32 %v1568, %v1584
      %v1592 = vadd.f32 %v1569, %v1584
      %v1593 = vadd.f32 %v1570, %v1584
      %v1594 = vadd.f32 %v1571, %v1584
      %v1595 = vadd.f32 %v1572, %v1584
      %v1596 = vadd.f32 %v1573, %v1584
      %v1597 = vadd.f32 %v1574, %v1584
      %v1598 = vadd.f32 %v1575, %v1584
      %v1599 = vadd.f32 %v1576, %v1584
      %v1600 = vadd.f32 %v1577, %v1584
      %v1601 = vadd.f32 %v1578, %v1584
      %v1602 = vmax.f32 %v1586, 0.0
      %v1603 = vmax.f32 %v1587, 0.0
      %v1604 = vmax.f32 %v1588, 0.0
      %v1605 = vmax.f32 %v1589, 0.0
      %v1606 = vmax.f32 %v1590, 0.0
      %v1607 = vmax.f32 %v1591, 0.0
      %v1608 = vmax.f32 %v1592, 0.0
      %v1609 = vmax.f32 %v1593, 0.0
      %v1610 = vmax.f32 %v1594, 0.0
      %v1611 = vmax.f32 %v1595, 0.0
      %v1612 = vmax.f32 %v1596, 0.0
      %v1613 = vmax.f32 %v1597, 0.0
      %v1614 = vmax.f32 %v1598, 0.0
      %v1615 = vmax.f32 %v1599, 0.0
      %v1616 = vmax.f32 %v1600, 0.0
      %v1617 = vmax.f32 %v1601, 0.0
      %1634 = vrot.lane.b32.xlu0 %v1602, 4
      %v1635 = vpop.permute.xlu0 %1634
      %1636 = vrot.lane.b32.xlu0 %v1603, 4
      %v1637 = vpop.permute.xlu0 %1636
      %1638 = vrot.lane.b32.xlu0 %v1604, 4
      %v1639 = vpop.permute.xlu0 %1638
      %1640 = vrot.lane.b32.xlu0 %v1605, 4
      %v1641 = vpop.permute.xlu0 %1640
      %1642 = vrot.lane.b32.xlu0 %v1606, 4
      %v1643 = vpop.permute.xlu0 %1642
      %1644 = vrot.lane.b32.xlu0 %v1607, 4
      %v1645 = vpop.permute.xlu0 %1644
      %1646 = vrot.lane.b32.xlu0 %v1608, 4
      %v1647 = vpop.permute.xlu0 %1646
      %1648 = vrot.lane.b32.xlu0 %v1609, 4
      %v1649 = vpop.permute.xlu0 %1648
      %1650 = vrot.lane.b32.xlu0 %v1610, 4
      %v1651 = vpop.permute.xlu0 %1650
      %1652 = vrot.lane.b32.xlu0 %v1611, 4
      %v1653 = vpop.permute.xlu0 %1652
      %1654 = vrot.lane.b32.xlu0 %v1612, 4
      %v1655 = vpop.permute.xlu0 %1654
      %1656 = vrot.lane.b32.xlu0 %v1613, 4
      %v1657 = vpop.permute.xlu0 %1656
      %1658 = vrot.lane.b32.xlu0 %v1614, 4
      %v1659 = vpop.permute.xlu0 %1658
      %1660 = vrot.lane.b32.xlu0 %v1615, 4
      %v1661 = vpop.permute.xlu0 %1660
      %1662 = vrot.lane.b32.xlu0 %v1616, 4
      %v1663 = vpop.permute.xlu0 %1662
      %1664 = vrot.lane.b32.xlu0 %v1617, 4
      %v1665 = vpop.permute.xlu0 %1664
      %v1682 = vsel %vm291, %v603, %v1635
      %v1683 = vsel %vm291, %v604, %v1637
      %v1684 = vsel %vm291, %v605, %v1639
      %v1685 = vsel %vm291, %v606, %v1641
      %v1686 = vsel %vm291, %v607, %v1643
      %v1687 = vsel %vm291, %v608, %v1645
      %v1688 = vsel %vm291, %v609, %v1647
      %v1689 = vsel %vm291, %v610, %v1649
      %v1690 = vsel %vm291, %v611, %v1651
      %v1691 = vsel %vm291, %v612, %v1653
      %v1692 = vsel %vm291, %v613, %v1655
      %v1693 = vsel %vm291, %v614, %v1657
      %v1694 = vsel %vm291, %v615, %v1659
      %v1695 = vsel %vm291, %v616, %v1661
      %v1696 = vsel %vm291, %v617, %v1663
      %v1697 = vsel %vm291, %v618, %v1665
      %vm1698 = vcmask 64512
      %1699 = vst.msk [vmem:[%s248] sm:$0xff] %vm1698, %v1682
      %1700 = vst.msk [vmem:[%s248 + $0x8] sm:$0xff] %vm1698, %v1683
      %1701 = vst.msk [vmem:[%s248 + $0x10] sm:$0xff] %vm1698, %v1684
      %1702 = vst.msk [vmem:[%s248 + $0x18] sm:$0xff] %vm1698, %v1685
      %1703 = vst.msk [vmem:[%s248 + $0x20] sm:$0xff] %vm1698, %v1686
      %1704 = vst.msk [vmem:[%s248 + $0x28] sm:$0xff] %vm1698, %v1687
      %1705 = vst.msk [vmem:[%s248 + $0x30] sm:$0xff] %vm1698, %v1688
      %1706 = vst.msk [vmem:[%s248 + $0x38] sm:$0xff] %vm1698, %v1689
      %1707 = vst.msk [vmem:[%s248 + $0x40] sm:$0xff] %vm1698, %v1690
      %1708 = vst.msk [vmem:[%s248 + $0x48] sm:$0xff] %vm1698, %v1691
      %1709 = vst.msk [vmem:[%s248 + $0x50] sm:$0xff] %vm1698, %v1692
      %1710 = vst.msk [vmem:[%s248 + $0x58] sm:$0xff] %vm1698, %v1693
      %1711 = vst.msk [vmem:[%s248 + $0x60] sm:$0xff] %vm1698, %v1694
      %1712 = vst.msk [vmem:[%s248 + $0x68] sm:$0xff] %vm1698, %v1695
      %1713 = vst.msk [vmem:[%s248 + $0x70] sm:$0xff] %vm1698, %v1696
      %1714 = vst.msk [vmem:[%s248 + $0x78] sm:$0xff] %vm1698, %v1697
      %s1715 = smul.u32 8, %s21
      %p1716 = scmp.lt.s32.totalorder %s20, 1
      %s1717 = scalar_select %p1716, %s20, 1
      %p1718 = scmp.lt.s32.totalorder %s1715, 15
      %s1719 = scalar_select %p1718, %s1715, 15
      %s1720 = smul.addr %s1719, 2
      %s1721 = smul.addr %s1717, 32
      %s1722 = sadd.s32 %s1720, %s1721
      %s1723 = smul.addr %s1722, 8
      %s1724 = scalar_lea.vmem %s5, %s1723
      // Predicated region
      $region41: #{ghost_module_forward.1} parent=39 // pred_check
        %p1725 = pneg %p158
      $region42: #{ghost_module_forward.1} parent=39 // pred_check_branch
        %1727 = sbr.rel (%p1725) target = $region44
      $region43: #{ghost_module_forward.1} parent=39 // pred_region
        %s1728 = smul.u32 8, %s21
      $region44: #{ghost_module_forward.1} parent=39 // pred_fallthru
        _
    $region40: #{ghost_module_forward.1} parent=5 // pred_fallthru
      _
    %p1729 = scmp.le.s32.totalorder 2, %s11
    // Predicated region
    $region45: #{ghost_module_forward.1} parent=5 // pred_check
      %p1730 = pneg %p1729
    $region46: #{ghost_module_forward.1} parent=5 // pred_check_branch
      %1732 = sbr.rel (%p1730) target = $region48
    $region47: #{ghost_module_forward.1} parent=5 // pred_region
      %s1733 = ssub.s32 %s11, 2
      // Predicated region
      $region49: #{ghost_module_forward.1} parent=47 // pred_check
        %p1734 = pneg %p164
      $region50: #{ghost_module_forward.1} parent=47 // pred_check_branch
        %1736 = sbr.rel (%p1734) target = $region52
      $region51: #{ghost_module_forward.1} parent=47 // pred_region
        %s1737 = smul.u32 8, %s23
        %p1738 = scmp.lt.s32.totalorder %s22, 1
        %s1739 = scalar_select %p1738, %s22, 1
        %p1740 = scmp.lt.s32.totalorder %s1737, 15
        %s1741 = scalar_select %p1740, %s1737, 15
        %s1742 = smul.addr %s1741, 2
        %s1743 = smul.addr %s1739, 32
        %s1744 = sadd.s32 %s1742, %s1743
        %s1745 = smul.addr %s1744, 8
        %s1746 = scalar_lea.vmem %s5, %s1745
      $region52: #{ghost_module_forward.1} parent=47 // pred_fallthru
        _
    $region48: #{ghost_module_forward.1} parent=5 // pred_fallthru
      _
  $region6: #{ghost_module_forward.1} parent=0 // loop_footer
    %s15 = sadd.s32 1, %s11
  $region7: #{ghost_module_forward.1} parent=0 // loop_footer_branch
    %10 = sbr.rel target = $region3
  $region8: #{ghost_module_forward.1} parent=0 // loop_exit
    _

</llo_original>
